<compile_context>
chip_gen: v7x
topology: tpu7x:2x2x1
jax: 0.10.0
libtpu: 0.0.40
codegen_flags: <defaults>
</compile_context>

<pallas_src>
import functools

import jax
import jax.numpy as jnp
from jax.experimental import pallas as pl
from jax.experimental.pallas import tpu as pltpu

HIDDEN_DIM = 64


# ---------------------------------------------------------------------------
# Fused Pallas kernel: num_layers LSTM layers + Linear head
# ---------------------------------------------------------------------------
def _make_fused_kernel(num_layers, S, B, H):
    """Builds a kernel closed over static sizes.

    Ref order (positional):
      x_ref (S*B, D0) bf16,
      [w_ih (D_l, 4H) bf16, w_hh (H, 4H) bf16, b (1, 4H) f32] * num_layers,
      lin_w (H, O) bf16, lin_b (1, O) f32,
      out_ref (B, O) f32,
      seq_scr (S*B, H) f32 VMEM scratch  (inter-layer sequence)
    Gate column order inside 4H is [i, f, o, g] (reordered in init_params).
    """

    def kernel(*refs):
        x_ref = refs[0]
        layer_refs = refs[1:1 + 3 * num_layers]
        lin_w_ref = refs[1 + 3 * num_layers]
        lin_b_ref = refs[2 + 3 * num_layers]
        out_ref = refs[3 + 3 * num_layers]
        seq_scr = refs[4 + 3 * num_layers]

        cur = x_ref[...]                              # (S*B, D_l) bf16
        h = None
        for l in range(num_layers):
            w_ih = layer_refs[3 * l][...]             # (D_l, 4H) bf16
            w_hh = layer_refs[3 * l + 1][...]         # (H, 4H)   bf16
            b = layer_refs[3 * l + 2][...]            # (1, 4H)   f32

            # Hoisted input projection: one MXU matmul for the whole sequence.
            gx = jnp.dot(cur, w_ih,
                         preferred_element_type=jnp.float32) + b   # (S*B, 4H)

            h = jnp.zeros((B, H), jnp.float32)
            c = jnp.zeros((B, H), jnp.float32)
            is_last = (l == num_layers - 1)

            for t in range(S):                        # fully unrolled
                gates = gx[t * B:(t + 1) * B, :] + jnp.dot(
                    h.astype(jnp.bfloat16), w_hh,
                    preferred_element_type=jnp.float32)             # (B, 4H)
                sfo = jax.nn.sigmoid(gates[:, :3 * H])              # i|f|o slab
                g_g = jnp.tanh(gates[:, 3 * H:])                    # g slab
                i_g = sfo[:, 0 * H:1 * H]
                f_g = sfo[:, 1 * H:2 * H]
                o_g = sfo[:, 2 * H:3 * H]
                c = f_g * c + i_g * g_g
                h = o_g * jnp.tanh(c)
                if not is_last:
                    seq_scr[t * B:(t + 1) * B, :] = h   # static-offset store

            if not is_last:
                cur = seq_scr[...].astype(jnp.bfloat16)  # next layer input

        # Final linear head on the last hidden state of the last layer.
        out_ref[...] = (
            jnp.dot(h.astype(jnp.bfloat16), lin_w_ref[...],
                    preferred_element_type=jnp.float32)
            + lin_b_ref[...])

    return kernel


# ---------------------------------------------------------------------------
# Wrapper
# ---------------------------------------------------------------------------
@functools.partial(jax.jit, static_argnames=("num_layers",))
def lstm_forward(x, params, num_layers):
    """Mirrors LSTM.forward: x (B, C, S, in_dim) -> (B, out_dim)."""
    B, _, S, D = x.shape
    H = params["layers"][0]["w_hh"].shape[0]
    O = params["lin_w"].shape[1]

    # glue: channel 0, time-major flatten (row index = t*B + b), bf16 operands
    x0 = x[:, 0, :, :]                                   # (B, S, D)
    x_tm = jnp.transpose(x0, (1, 0, 2)).reshape(S * B, D).astype(jnp.bfloat16)

    args = [x_tm]
    in_specs = [pl.BlockSpec((S * B, D), lambda i: (0, 0))]
    for l in range(num_layers):
        p = params["layers"][l]
        d_in = p["w_ih"].shape[0]
        args += [p["w_ih"], p["w_hh"], p["b"]]
        in_specs += [
            pl.BlockSpec((d_in, 4 * H), lambda i: (0, 0)),
            pl.BlockSpec((H, 4 * H), lambda i: (0, 0)),
            pl.BlockSpec((1, 4 * H), lambda i: (0, 0)),
        ]
    args += [params["lin_w"], params["lin_b"]]
    in_specs += [
        pl.BlockSpec((H, O), lambda i: (0, 0)),
        pl.BlockSpec((1, O), lambda i: (0, 0)),
    ]

    grid_spec = pltpu.PrefetchScalarGridSpec(
        num_scalar_prefetch=0,
        grid=(1,),
        in_specs=in_specs,
        out_specs=pl.BlockSpec((B, O), lambda i: (0, 0)),
        scratch_shapes=[pltpu.VMEM((S * B, H), jnp.float32)],
    )
    return pl.pallas_call(
        _make_fused_kernel(num_layers, S, B, H),
        grid_spec=grid_spec,
        out_shape=jax.ShapeDtypeStruct((B, O), jnp.float32),
        compiler_params=pltpu.CompilerParams(
            dimension_semantics=("arbitrary",)),
    )(*args)


# ---------------------------------------------------------------------------
# Init (PyTorch-style uniform), with gate reorder [i,f,g,o] -> [i,f,o,g]
# ---------------------------------------------------------------------------
def _reorder_ifog(w_t, H):
    """Permute 4H columns from PyTorch [i,f,g,o] to kernel order [i,f,o,g]."""
    return jnp.concatenate(
        [w_t[:, :2 * H], w_t[:, 3 * H:4 * H], w_t[:, 2 * H:3 * H]], axis=1)


def init_params(key, in_dim, out_dim, num_layers, hidden_dim=HIDDEN_DIM):
    params = {"layers": []}
    H = hidden_dim
    bound = 1.0 / jnp.sqrt(jnp.float32(H))
    for l in range(num_layers):
        d_in = in_dim if l == 0 else H
        key, k1, k2, k3, k4 = jax.random.split(key, 5)
        w_ih = jax.random.uniform(k1, (4 * H, d_in), jnp.float32, -bound, bound)
        w_hh = jax.random.uniform(k2, (4 * H, H), jnp.float32, -bound, bound)
        b_ih = jax.random.uniform(k3, (4 * H,), jnp.float32, -bound, bound)
        b_hh = jax.random.uniform(k4, (4 * H,), jnp.float32, -bound, bound)
        params["layers"].append({
            # pre-transpose for (x @ W), reorder gate columns, bf16 weights
            "w_ih": _reorder_ifog(w_ih.T, H).astype(jnp.bfloat16),   # (d_in,4H)
            "w_hh": _reorder_ifog(w_hh.T, H).astype(jnp.bfloat16),   # (H, 4H)
            "b": _reorder_ifog((b_ih + b_hh).reshape(1, 4 * H), H),  # (1, 4H) f32
        })
    key, k1, k2 = jax.random.split(key, 3)
    params["lin_w"] = jax.random.uniform(
        k1, (out_dim, H), jnp.float32, -bound, bound).T.astype(jnp.bfloat16)
    params["lin_b"] = jax.random.uniform(
        k2, (out_dim,), jnp.float32, -bound, bound).reshape(1, out_dim)
    return params


# ---------------------------------------------------------------------------
# Pure-JAX reference (same bf16-weight / f32-accumulate function)
# ---------------------------------------------------------------------------
def lstm_forward_ref(x, params, num_layers, hidden_dim=HIDDEN_DIM):
    H = hidden_dim
    seq = x[:, 0, :, :].astype(jnp.float32)              # (B, S, D)
    B, S, _ = seq.shape
    for l in range(num_layers):
        p = params["layers"][l]
        h = jnp.zeros((B, H), jnp.float32)
        c = jnp.zeros((B, H), jnp.float32)
        outs = []
        for t in range(S):
            gates = (
                jnp.dot(seq[:, t, :].astype(jnp.bfloat16), p["w_ih"],
                        preferred_element_type=jnp.float32)
                + jnp.dot(h.astype(jnp.bfloat16), p["w_hh"],
                          preferred_element_type=jnp.float32)
                + p["b"])
            sfo = jax.nn.sigmoid(gates[:, :3 * H])
            g_g = jnp.tanh(gates[:, 3 * H:])
            i_g, f_g, o_g = sfo[:, :H], sfo[:, H:2 * H], sfo[:, 2 * H:]
            c = f_g * c + i_g * g_g
            h = o_g * jnp.tanh(c)
            outs.append(h)
        seq = jnp.stack(outs, axis=1)                    # (B, S, H)
    return (jnp.dot(seq[:, -1, :].astype(jnp.bfloat16), params["lin_w"],
                    preferred_element_type=jnp.float32)
            + params["lin_b"])


# ---------------------------------------------------------------------------
if __name__ == "__main__":
    B, C, S, IN_DIM = 2, 3, 8, 16
    OUT_DIM, NUM_LAYERS = 8, 2

    key = jax.random.PRNGKey(0)
    key, kx = jax.random.split(key)
    x = jax.random.normal(kx, (B, C, S, IN_DIM), jnp.float32)

    params = init_params(key, IN_DIM, OUT_DIM, NUM_LAYERS)

    out = lstm_forward(x, params, NUM_LAYERS)
    out = jax.block_until_ready(out)

    ref = lstm_forward_ref(x, params, NUM_LAYERS)
    assert out.shape == (B, OUT_DIM)
    assert jnp.allclose(out, ref, atol=2e-2, rtol=2e-2), (out, ref)

    print("KERNEL_OK")
</pallas_src>

<mosaic_0001>
module attributes {stable_mosaic.version = 11 : i64} {
  func.func @kernel(%arg0: i32, %arg1: memref<16x16xbf16, #tpu.memory_space<vmem>>, %arg2: memref<16x256xbf16, #tpu.memory_space<vmem>>, %arg3: memref<64x256xbf16, #tpu.memory_space<vmem>>, %arg4: memref<1x256xf32, #tpu.memory_space<vmem>>, %arg5: memref<64x256xbf16, #tpu.memory_space<vmem>>, %arg6: memref<64x256xbf16, #tpu.memory_space<vmem>>, %arg7: memref<1x256xf32, #tpu.memory_space<vmem>>, %arg8: memref<64x8xbf16, #tpu.memory_space<vmem>>, %arg9: memref<1x8xf32, #tpu.memory_space<vmem>>, %arg10: memref<2x8xf32, #tpu.memory_space<vmem>>, %arg11: memref<16x64xf32, #tpu.memory_space<vmem>>) attributes {dimension_semantics = [#tpu.dimension_semantics<arbitrary>], iteration_bounds = array<i64: 1>, scalar_prefetch = 0 : i64, scratch_operands = 1 : i64, tpu.core_type = #tpu.core_type<tc>, window_params = [{pipeline_mode = #tpu.pipeline_mode<synchronous>, transform_indices = @transform_0, window_bounds = array<i64: 16, 16>}, {pipeline_mode = #tpu.pipeline_mode<synchronous>, transform_indices = @transform_1, window_bounds = array<i64: 16, 256>}, {pipeline_mode = #tpu.pipeline_mode<synchronous>, transform_indices = @transform_2, window_bounds = array<i64: 64, 256>}, {pipeline_mode = #tpu.pipeline_mode<synchronous>, transform_indices = @transform_3, window_bounds = array<i64: 1, 256>}, {pipeline_mode = #tpu.pipeline_mode<synchronous>, transform_indices = @transform_4, window_bounds = array<i64: 64, 256>}, {pipeline_mode = #tpu.pipeline_mode<synchronous>, transform_indices = @transform_5, window_bounds = array<i64: 64, 256>}, {pipeline_mode = #tpu.pipeline_mode<synchronous>, transform_indices = @transform_6, window_bounds = array<i64: 1, 256>}, {pipeline_mode = #tpu.pipeline_mode<synchronous>, transform_indices = @transform_7, window_bounds = array<i64: 64, 8>}, {pipeline_mode = #tpu.pipeline_mode<synchronous>, transform_indices = @transform_8, window_bounds = array<i64: 1, 8>}, {pipeline_mode = #tpu.pipeline_mode<synchronous>, transform_indices = @transform_9, window_bounds = array<i64: 2, 8>}]} {
    %c0 = arith.constant 0 : index
    %c0_0 = arith.constant 0 : index
    %0 = vector.load %arg1[%c0, %c0_0] : memref<16x16xbf16, #tpu.memory_space<vmem>>, vector<16x16xbf16>
    %c0_1 = arith.constant 0 : index
    %c0_2 = arith.constant 0 : index
    %1 = vector.load %arg2[%c0_1, %c0_2] : memref<16x256xbf16, #tpu.memory_space<vmem>>, vector<16x256xbf16>
    %c0_3 = arith.constant 0 : index
    %c0_4 = arith.constant 0 : index
    %2 = vector.load %arg3[%c0_3, %c0_4] : memref<64x256xbf16, #tpu.memory_space<vmem>>, vector<64x256xbf16>
    %c0_5 = arith.constant 0 : index
    %c0_6 = arith.constant 0 : index
    %3 = vector.load %arg4[%c0_5, %c0_6] : memref<1x256xf32, #tpu.memory_space<vmem>>, vector<1x256xf32>
    %cst = arith.constant dense<0.000000e+00> : vector<16x256xf32>
    %4 = tpu.matmul %0, %1, %cst {dimension_numbers = #tpu.dot_dimension_numbers<[1], [0], [0], [1], [0, 0, 1, 1], [], []>} : vector<16x16xbf16>, vector<16x256xbf16>, vector<16x256xf32> -> vector<16x256xf32>
    %5 = vector.broadcast %3 : vector<1x256xf32> to vector<16x256xf32>
    %6 = arith.addf %4, %5 : vector<16x256xf32>
    %cst_7 = arith.constant 0.000000e+00 : f32
    %7 = vector.broadcast %cst_7 : f32 to vector<2x64xf32>
    %cst_8 = arith.constant 0.000000e+00 : f32
    %8 = vector.broadcast %cst_8 : f32 to vector<2x64xf32>
    %9 = vector.extract_strided_slice %6 {offsets = [0, 0], sizes = [2, 256], strides = [1, 1]} : vector<16x256xf32> to vector<2x256xf32>
    %10 = arith.truncf %7 : vector<2x64xf32> to vector<2x64xbf16>
    %cst_9 = arith.constant dense<0.000000e+00> : vector<2x256xf32>
    %11 = tpu.matmul %10, %2, %cst_9 {dimension_numbers = #tpu.dot_dimension_numbers<[1], [0], [0], [1], [0, 0, 1, 1], [], []>} : vector<2x64xbf16>, vector<64x256xbf16>, vector<2x256xf32> -> vector<2x256xf32>
    %12 = arith.addf %9, %11 : vector<2x256xf32>
    %13 = vector.extract_strided_slice %12 {offsets = [0, 0], sizes = [2, 192], strides = [1, 1]} : vector<2x256xf32> to vector<2x192xf32>
    %14 = arith.negf %13 : vector<2x192xf32>
    %15 = math.exp %14 : vector<2x192xf32>
    %cst_10 = arith.constant 1.000000e+00 : f32
    %16 = vector.broadcast %cst_10 : f32 to vector<2x192xf32>
    %17 = arith.addf %16, %15 : vector<2x192xf32>
    %18 = arith.divf %16, %17 : vector<2x192xf32>
    %19 = vector.extract_strided_slice %12 {offsets = [0, 192], sizes = [2, 64], strides = [1, 1]} : vector<2x256xf32> to vector<2x64xf32>
    %20 = math.tanh %19 : vector<2x64xf32>
    %21 = vector.extract_strided_slice %18 {offsets = [0, 0], sizes = [2, 64], strides = [1, 1]} : vector<2x192xf32> to vector<2x64xf32>
    %22 = vector.extract_strided_slice %18 {offsets = [0, 64], sizes = [2, 64], strides = [1, 1]} : vector<2x192xf32> to vector<2x64xf32>
    %23 = vector.extract_strided_slice %18 {offsets = [0, 128], sizes = [2, 64], strides = [1, 1]} : vector<2x192xf32> to vector<2x64xf32>
    %24 = arith.mulf %22, %8 : vector<2x64xf32>
    %25 = arith.mulf %21, %20 : vector<2x64xf32>
    %26 = arith.addf %24, %25 : vector<2x64xf32>
    %27 = math.tanh %26 : vector<2x64xf32>
    %28 = arith.mulf %23, %27 : vector<2x64xf32>
    %c0_11 = arith.constant 0 : index
    %c0_12 = arith.constant 0 : index
    %29 = vector.load %arg11[%c0_11, %c0_12] : memref<16x64xf32, #tpu.memory_space<vmem>>, vector<2x64xf32>
    tpu.vector_store %arg11[%c0_11, %c0_12], %28 {strides = array<i32>} : memref<16x64xf32, #tpu.memory_space<vmem>>, vector<2x64xf32>,
    %30 = vector.extract_strided_slice %6 {offsets = [2, 0], sizes = [2, 256], strides = [1, 1]} : vector<16x256xf32> to vector<2x256xf32>
    %31 = arith.truncf %28 : vector<2x64xf32> to vector<2x64xbf16>
    %cst_13 = arith.constant dense<0.000000e+00> : vector<2x256xf32>
    %32 = tpu.matmul %31, %2, %cst_13 {dimension_numbers = #tpu.dot_dimension_numbers<[1], [0], [0], [1], [0, 0, 1, 1], [], []>} : vector<2x64xbf16>, vector<64x256xbf16>, vector<2x256xf32> -> vector<2x256xf32>
    %33 = arith.addf %30, %32 : vector<2x256xf32>
    %34 = vector.extract_strided_slice %33 {offsets = [0, 0], sizes = [2, 192], strides = [1, 1]} : vector<2x256xf32> to vector<2x192xf32>
    %35 = arith.negf %34 : vector<2x192xf32>
    %36 = math.exp %35 : vector<2x192xf32>
    %cst_14 = arith.constant 1.000000e+00 : f32
    %37 = vector.broadcast %cst_14 : f32 to vector<2x192xf32>
    %38 = arith.addf %37, %36 : vector<2x192xf32>
    %39 = arith.divf %37, %38 : vector<2x192xf32>
    %40 = vector.extract_strided_slice %33 {offsets = [0, 192], sizes = [2, 64], strides = [1, 1]} : vector<2x256xf32> to vector<2x64xf32>
    %41 = math.tanh %40 : vector<2x64xf32>
    %42 = vector.extract_strided_slice %39 {offsets = [0, 0], sizes = [2, 64], strides = [1, 1]} : vector<2x192xf32> to vector<2x64xf32>
    %43 = vector.extract_strided_slice %39 {offsets = [0, 64], sizes = [2, 64], strides = [1, 1]} : vector<2x192xf32> to vector<2x64xf32>
    %44 = vector.extract_strided_slice %39 {offsets = [0, 128], sizes = [2, 64], strides = [1, 1]} : vector<2x192xf32> to vector<2x64xf32>
    %45 = arith.mulf %43, %26 : vector<2x64xf32>
    %46 = arith.mulf %42, %41 : vector<2x64xf32>
    %47 = arith.addf %45, %46 : vector<2x64xf32>
    %48 = math.tanh %47 : vector<2x64xf32>
    %49 = arith.mulf %44, %48 : vector<2x64xf32>
    %c2 = arith.constant 2 : index
    %c0_15 = arith.constant 0 : index
    %50 = vector.load %arg11[%c2, %c0_15] : memref<16x64xf32, #tpu.memory_space<vmem>>, vector<2x64xf32>
    tpu.vector_store %arg11[%c2, %c0_15], %49 {strides = array<i32>} : memref<16x64xf32, #tpu.memory_space<vmem>>, vector<2x64xf32>,
    %51 = vector.extract_strided_slice %6 {offsets = [4, 0], sizes = [2, 256], strides = [1, 1]} : vector<16x256xf32> to vector<2x256xf32>
    %52 = arith.truncf %49 : vector<2x64xf32> to vector<2x64xbf16>
    %cst_16 = arith.constant dense<0.000000e+00> : vector<2x256xf32>
    %53 = tpu.matmul %52, %2, %cst_16 {dimension_numbers = #tpu.dot_dimension_numbers<[1], [0], [0], [1], [0, 0, 1, 1], [], []>} : vector<2x64xbf16>, vector<64x256xbf16>, vector<2x256xf32> -> vector<2x256xf32>
    %54 = arith.addf %51, %53 : vector<2x256xf32>
    %55 = vector.extract_strided_slice %54 {offsets = [0, 0], sizes = [2, 192], strides = [1, 1]} : vector<2x256xf32> to vector<2x192xf32>
    %56 = arith.negf %55 : vector<2x192xf32>
    %57 = math.exp %56 : vector<2x192xf32>
    %cst_17 = arith.constant 1.000000e+00 : f32
    %58 = vector.broadcast %cst_17 : f32 to vector<2x192xf32>
    %59 = arith.addf %58, %57 : vector<2x192xf32>
    %60 = arith.divf %58, %59 : vector<2x192xf32>
    %61 = vector.extract_strided_slice %54 {offsets = [0, 192], sizes = [2, 64], strides = [1, 1]} : vector<2x256xf32> to vector<2x64xf32>
    %62 = math.tanh %61 : vector<2x64xf32>
    %63 = vector.extract_strided_slice %60 {offsets = [0, 0], sizes = [2, 64], strides = [1, 1]} : vector<2x192xf32> to vector<2x64xf32>
    %64 = vector.extract_strided_slice %60 {offsets = [0, 64], sizes = [2, 64], strides = [1, 1]} : vector<2x192xf32> to vector<2x64xf32>
    %65 = vector.extract_strided_slice %60 {offsets = [0, 128], sizes = [2, 64], strides = [1, 1]} : vector<2x192xf32> to vector<2x64xf32>
    %66 = arith.mulf %64, %47 : vector<2x64xf32>
    %67 = arith.mulf %63, %62 : vector<2x64xf32>
    %68 = arith.addf %66, %67 : vector<2x64xf32>
    %69 = math.tanh %68 : vector<2x64xf32>
    %70 = arith.mulf %65, %69 : vector<2x64xf32>
    %c4 = arith.constant 4 : index
    %c0_18 = arith.constant 0 : index
    %71 = vector.load %arg11[%c4, %c0_18] : memref<16x64xf32, #tpu.memory_space<vmem>>, vector<2x64xf32>
    tpu.vector_store %arg11[%c4, %c0_18], %70 {strides = array<i32>} : memref<16x64xf32, #tpu.memory_space<vmem>>, vector<2x64xf32>,
    %72 = vector.extract_strided_slice %6 {offsets = [6, 0], sizes = [2, 256], strides = [1, 1]} : vector<16x256xf32> to vector<2x256xf32>
    %73 = arith.truncf %70 : vector<2x64xf32> to vector<2x64xbf16>
    %cst_19 = arith.constant dense<0.000000e+00> : vector<2x256xf32>
    %74 = tpu.matmul %73, %2, %cst_19 {dimension_numbers = #tpu.dot_dimension_numbers<[1], [0], [0], [1], [0, 0, 1, 1], [], []>} : vector<2x64xbf16>, vector<64x256xbf16>, vector<2x256xf32> -> vector<2x256xf32>
    %75 = arith.addf %72, %74 : vector<2x256xf32>
    %76 = vector.extract_strided_slice %75 {offsets = [0, 0], sizes = [2, 192], strides = [1, 1]} : vector<2x256xf32> to vector<2x192xf32>
    %77 = arith.negf %76 : vector<2x192xf32>
    %78 = math.exp %77 : vector<2x192xf32>
    %cst_20 = arith.constant 1.000000e+00 : f32
    %79 = vector.broadcast %cst_20 : f32 to vector<2x192xf32>
    %80 = arith.addf %79, %78 : vector<2x192xf32>
    %81 = arith.divf %79, %80 : vector<2x192xf32>
    %82 = vector.extract_strided_slice %75 {offsets = [0, 192], sizes = [2, 64], strides = [1, 1]} : vector<2x256xf32> to vector<2x64xf32>
    %83 = math.tanh %82 : vector<2x64xf32>
    %84 = vector.extract_strided_slice %81 {offsets = [0, 0], sizes = [2, 64], strides = [1, 1]} : vector<2x192xf32> to vector<2x64xf32>
    %85 = vector.extract_strided_slice %81 {offsets = [0, 64], sizes = [2, 64], strides = [1, 1]} : vector<2x192xf32> to vector<2x64xf32>
    %86 = vector.extract_strided_slice %81 {offsets = [0, 128], sizes = [2, 64], strides = [1, 1]} : vector<2x192xf32> to vector<2x64xf32>
    %87 = arith.mulf %85, %68 : vector<2x64xf32>
    %88 = arith.mulf %84, %83 : vector<2x64xf32>
    %89 = arith.addf %87, %88 : vector<2x64xf32>
    %90 = math.tanh %89 : vector<2x64xf32>
    %91 = arith.mulf %86, %90 : vector<2x64xf32>
    %c6 = arith.constant 6 : index
    %c0_21 = arith.constant 0 : index
    %92 = vector.load %arg11[%c6, %c0_21] : memref<16x64xf32, #tpu.memory_space<vmem>>, vector<2x64xf32>
    tpu.vector_store %arg11[%c6, %c0_21], %91 {strides = array<i32>} : memref<16x64xf32, #tpu.memory_space<vmem>>, vector<2x64xf32>,
    %93 = vector.extract_strided_slice %6 {offsets = [8, 0], sizes = [2, 256], strides = [1, 1]} : vector<16x256xf32> to vector<2x256xf32>
    %94 = arith.truncf %91 : vector<2x64xf32> to vector<2x64xbf16>
    %cst_22 = arith.constant dense<0.000000e+00> : vector<2x256xf32>
    %95 = tpu.matmul %94, %2, %cst_22 {dimension_numbers = #tpu.dot_dimension_numbers<[1], [0], [0], [1], [0, 0, 1, 1], [], []>} : vector<2x64xbf16>, vector<64x256xbf16>, vector<2x256xf32> -> vector<2x256xf32>
    %96 = arith.addf %93, %95 : vector<2x256xf32>
    %97 = vector.extract_strided_slice %96 {offsets = [0, 0], sizes = [2, 192], strides = [1, 1]} : vector<2x256xf32> to vector<2x192xf32>
    %98 = arith.negf %97 : vector<2x192xf32>
    %99 = math.exp %98 : vector<2x192xf32>
    %cst_23 = arith.constant 1.000000e+00 : f32
    %100 = vector.broadcast %cst_23 : f32 to vector<2x192xf32>
    %101 = arith.addf %100, %99 : vector<2x192xf32>
    %102 = arith.divf %100, %101 : vector<2x192xf32>
    %103 = vector.extract_strided_slice %96 {offsets = [0, 192], sizes = [2, 64], strides = [1, 1]} : vector<2x256xf32> to vector<2x64xf32>
    %104 = math.tanh %103 : vector<2x64xf32>
    %105 = vector.extract_strided_slice %102 {offsets = [0, 0], sizes = [2, 64], strides = [1, 1]} : vector<2x192xf32> to vector<2x64xf32>
    %106 = vector.extract_strided_slice %102 {offsets = [0, 64], sizes = [2, 64], strides = [1, 1]} : vector<2x192xf32> to vector<2x64xf32>
    %107 = vector.extract_strided_slice %102 {offsets = [0, 128], sizes = [2, 64], strides = [1, 1]} : vector<2x192xf32> to vector<2x64xf32>
    %108 = arith.mulf %106, %89 : vector<2x64xf32>
    %109 = arith.mulf %105, %104 : vector<2x64xf32>
    %110 = arith.addf %108, %109 : vector<2x64xf32>
    %111 = math.tanh %110 : vector<2x64xf32>
    %112 = arith.mulf %107, %111 : vector<2x64xf32>
    %c8 = arith.constant 8 : index
    %c0_24 = arith.constant 0 : index
    %113 = vector.load %arg11[%c8, %c0_24] : memref<16x64xf32, #tpu.memory_space<vmem>>, vector<2x64xf32>
    tpu.vector_store %arg11[%c8, %c0_24], %112 {strides = array<i32>} : memref<16x64xf32, #tpu.memory_space<vmem>>, vector<2x64xf32>,
    %114 = vector.extract_strided_slice %6 {offsets = [10, 0], sizes = [2, 256], strides = [1, 1]} : vector<16x256xf32> to vector<2x256xf32>
    %115 = arith.truncf %112 : vector<2x64xf32> to vector<2x64xbf16>
    %cst_25 = arith.constant dense<0.000000e+00> : vector<2x256xf32>
    %116 = tpu.matmul %115, %2, %cst_25 {dimension_numbers = #tpu.dot_dimension_numbers<[1], [0], [0], [1], [0, 0, 1, 1], [], []>} : vector<2x64xbf16>, vector<64x256xbf16>, vector<2x256xf32> -> vector<2x256xf32>
    %117 = arith.addf %114, %116 : vector<2x256xf32>
    %118 = vector.extract_strided_slice %117 {offsets = [0, 0], sizes = [2, 192], strides = [1, 1]} : vector<2x256xf32> to vector<2x192xf32>
    %119 = arith.negf %118 : vector<2x192xf32>
    %120 = math.exp %119 : vector<2x192xf32>
    %cst_26 = arith.constant 1.000000e+00 : f32
    %121 = vector.broadcast %cst_26 : f32 to vector<2x192xf32>
    %122 = arith.addf %121, %120 : vector<2x192xf32>
    %123 = arith.divf %121, %122 : vector<2x192xf32>
    %124 = vector.extract_strided_slice %117 {offsets = [0, 192], sizes = [2, 64], strides = [1, 1]} : vector<2x256xf32> to vector<2x64xf32>
    %125 = math.tanh %124 : vector<2x64xf32>
    %126 = vector.extract_strided_slice %123 {offsets = [0, 0], sizes = [2, 64], strides = [1, 1]} : vector<2x192xf32> to vector<2x64xf32>
    %127 = vector.extract_strided_slice %123 {offsets = [0, 64], sizes = [2, 64], strides = [1, 1]} : vector<2x192xf32> to vector<2x64xf32>
    %128 = vector.extract_strided_slice %123 {offsets = [0, 128], sizes = [2, 64], strides = [1, 1]} : vector<2x192xf32> to vector<2x64xf32>
    %129 = arith.mulf %127, %110 : vector<2x64xf32>
    %130 = arith.mulf %126, %125 : vector<2x64xf32>
    %131 = arith.addf %129, %130 : vector<2x64xf32>
    %132 = math.tanh %131 : vector<2x64xf32>
    %133 = arith.mulf %128, %132 : vector<2x64xf32>
    %c10 = arith.constant 10 : index
    %c0_27 = arith.constant 0 : index
    %134 = vector.load %arg11[%c10, %c0_27] : memref<16x64xf32, #tpu.memory_space<vmem>>, vector<2x64xf32>
    tpu.vector_store %arg11[%c10, %c0_27], %133 {strides = array<i32>} : memref<16x64xf32, #tpu.memory_space<vmem>>, vector<2x64xf32>,
    %135 = vector.extract_strided_slice %6 {offsets = [12, 0], sizes = [2, 256], strides = [1, 1]} : vector<16x256xf32> to vector<2x256xf32>
    %136 = arith.truncf %133 : vector<2x64xf32> to vector<2x64xbf16>
    %cst_28 = arith.constant dense<0.000000e+00> : vector<2x256xf32>
    %137 = tpu.matmul %136, %2, %cst_28 {dimension_numbers = #tpu.dot_dimension_numbers<[1], [0], [0], [1], [0, 0, 1, 1], [], []>} : vector<2x64xbf16>, vector<64x256xbf16>, vector<2x256xf32> -> vector<2x256xf32>
    %138 = arith.addf %135, %137 : vector<2x256xf32>
    %139 = vector.extract_strided_slice %138 {offsets = [0, 0], sizes = [2, 192], strides = [1, 1]} : vector<2x256xf32> to vector<2x192xf32>
    %140 = arith.negf %139 : vector<2x192xf32>
    %141 = math.exp %140 : vector<2x192xf32>
    %cst_29 = arith.constant 1.000000e+00 : f32
    %142 = vector.broadcast %cst_29 : f32 to vector<2x192xf32>
    %143 = arith.addf %142, %141 : vector<2x192xf32>
    %144 = arith.divf %142, %143 : vector<2x192xf32>
    %145 = vector.extract_strided_slice %138 {offsets = [0, 192], sizes = [2, 64], strides = [1, 1]} : vector<2x256xf32> to vector<2x64xf32>
    %146 = math.tanh %145 : vector<2x64xf32>
    %147 = vector.extract_strided_slice %144 {offsets = [0, 0], sizes = [2, 64], strides = [1, 1]} : vector<2x192xf32> to vector<2x64xf32>
    %148 = vector.extract_strided_slice %144 {offsets = [0, 64], sizes = [2, 64], strides = [1, 1]} : vector<2x192xf32> to vector<2x64xf32>
    %149 = vector.extract_strided_slice %144 {offsets = [0, 128], sizes = [2, 64], strides = [1, 1]} : vector<2x192xf32> to vector<2x64xf32>
    %150 = arith.mulf %148, %131 : vector<2x64xf32>
    %151 = arith.mulf %147, %146 : vector<2x64xf32>
    %152 = arith.addf %150, %151 : vector<2x64xf32>
    %153 = math.tanh %152 : vector<2x64xf32>
    %154 = arith.mulf %149, %153 : vector<2x64xf32>
    %c12 = arith.constant 12 : index
    %c0_30 = arith.constant 0 : index
    %155 = vector.load %arg11[%c12, %c0_30] : memref<16x64xf32, #tpu.memory_space<vmem>>, vector<2x64xf32>
    tpu.vector_store %arg11[%c12, %c0_30], %154 {strides = array<i32>} : memref<16x64xf32, #tpu.memory_space<vmem>>, vector<2x64xf32>,
    %156 = vector.extract_strided_slice %6 {offsets = [14, 0], sizes = [2, 256], strides = [1, 1]} : vector<16x256xf32> to vector<2x256xf32>
    %157 = arith.truncf %154 : vector<2x64xf32> to vector<2x64xbf16>
    %cst_31 = arith.constant dense<0.000000e+00> : vector<2x256xf32>
    %158 = tpu.matmul %157, %2, %cst_31 {dimension_numbers = #tpu.dot_dimension_numbers<[1], [0], [0], [1], [0, 0, 1, 1], [], []>} : vector<2x64xbf16>, vector<64x256xbf16>, vector<2x256xf32> -> vector<2x256xf32>
    %159 = arith.addf %156, %158 : vector<2x256xf32>
    %160 = vector.extract_strided_slice %159 {offsets = [0, 0], sizes = [2, 192], strides = [1, 1]} : vector<2x256xf32> to vector<2x192xf32>
    %161 = arith.negf %160 : vector<2x192xf32>
    %162 = math.exp %161 : vector<2x192xf32>
    %cst_32 = arith.constant 1.000000e+00 : f32
    %163 = vector.broadcast %cst_32 : f32 to vector<2x192xf32>
    %164 = arith.addf %163, %162 : vector<2x192xf32>
    %165 = arith.divf %163, %164 : vector<2x192xf32>
    %166 = vector.extract_strided_slice %159 {offsets = [0, 192], sizes = [2, 64], strides = [1, 1]} : vector<2x256xf32> to vector<2x64xf32>
    %167 = math.tanh %166 : vector<2x64xf32>
    %168 = vector.extract_strided_slice %165 {offsets = [0, 0], sizes = [2, 64], strides = [1, 1]} : vector<2x192xf32> to vector<2x64xf32>
    %169 = vector.extract_strided_slice %165 {offsets = [0, 64], sizes = [2, 64], strides = [1, 1]} : vector<2x192xf32> to vector<2x64xf32>
    %170 = vector.extract_strided_slice %165 {offsets = [0, 128], sizes = [2, 64], strides = [1, 1]} : vector<2x192xf32> to vector<2x64xf32>
    %171 = arith.mulf %169, %152 : vector<2x64xf32>
    %172 = arith.mulf %168, %167 : vector<2x64xf32>
    %173 = arith.addf %171, %172 : vector<2x64xf32>
    %174 = math.tanh %173 : vector<2x64xf32>
    %175 = arith.mulf %170, %174 : vector<2x64xf32>
    %c14 = arith.constant 14 : index
    %c0_33 = arith.constant 0 : index
    %176 = vector.load %arg11[%c14, %c0_33] : memref<16x64xf32, #tpu.memory_space<vmem>>, vector<2x64xf32>
    tpu.vector_store %arg11[%c14, %c0_33], %175 {strides = array<i32>} : memref<16x64xf32, #tpu.memory_space<vmem>>, vector<2x64xf32>,
    %c0_34 = arith.constant 0 : index
    %c0_35 = arith.constant 0 : index
    %177 = vector.load %arg11[%c0_34, %c0_35] : memref<16x64xf32, #tpu.memory_space<vmem>>, vector<16x64xf32>
    %178 = arith.truncf %177 : vector<16x64xf32> to vector<16x64xbf16>
    %c0_36 = arith.constant 0 : index
    %c0_37 = arith.constant 0 : index
    %179 = vector.load %arg5[%c0_36, %c0_37] : memref<64x256xbf16, #tpu.memory_space<vmem>>, vector<64x256xbf16>
    %c0_38 = arith.constant 0 : index
    %c0_39 = arith.constant 0 : index
    %180 = vector.load %arg6[%c0_38, %c0_39] : memref<64x256xbf16, #tpu.memory_space<vmem>>, vector<64x256xbf16>
    %c0_40 = arith.constant 0 : index
    %c0_41 = arith.constant 0 : index
    %181 = vector.load %arg7[%c0_40, %c0_41] : memref<1x256xf32, #tpu.memory_space<vmem>>, vector<1x256xf32>
    %cst_42 = arith.constant dense<0.000000e+00> : vector<16x256xf32>
    %182 = tpu.matmul %178, %179, %cst_42 {dimension_numbers = #tpu.dot_dimension_numbers<[1], [0], [0], [1], [0, 0, 1, 1], [], []>} : vector<16x64xbf16>, vector<64x256xbf16>, vector<16x256xf32> -> vector<16x256xf32>
    %183 = vector.broadcast %181 : vector<1x256xf32> to vector<16x256xf32>
    %184 = arith.addf %182, %183 : vector<16x256xf32>
    %cst_43 = arith.constant 0.000000e+00 : f32
    %185 = vector.broadcast %cst_43 : f32 to vector<2x64xf32>
    %cst_44 = arith.constant 0.000000e+00 : f32
    %186 = vector.broadcast %cst_44 : f32 to vector<2x64xf32>
    %187 = vector.extract_strided_slice %184 {offsets = [0, 0], sizes = [2, 256], strides = [1, 1]} : vector<16x256xf32> to vector<2x256xf32>
    %188 = arith.truncf %185 : vector<2x64xf32> to vector<2x64xbf16>
    %cst_45 = arith.constant dense<0.000000e+00> : vector<2x256xf32>
    %189 = tpu.matmul %188, %180, %cst_45 {dimension_numbers = #tpu.dot_dimension_numbers<[1], [0], [0], [1], [0, 0, 1, 1], [], []>} : vector<2x64xbf16>, vector<64x256xbf16>, vector<2x256xf32> -> vector<2x256xf32>
    %190 = arith.addf %187, %189 : vector<2x256xf32>
    %191 = vector.extract_strided_slice %190 {offsets = [0, 0], sizes = [2, 192], strides = [1, 1]} : vector<2x256xf32> to vector<2x192xf32>
    %192 = arith.negf %191 : vector<2x192xf32>
    %193 = math.exp %192 : vector<2x192xf32>
    %cst_46 = arith.constant 1.000000e+00 : f32
    %194 = vector.broadcast %cst_46 : f32 to vector<2x192xf32>
    %195 = arith.addf %194, %193 : vector<2x192xf32>
    %196 = arith.divf %194, %195 : vector<2x192xf32>
    %197 = vector.extract_strided_slice %190 {offsets = [0, 192], sizes = [2, 64], strides = [1, 1]} : vector<2x256xf32> to vector<2x64xf32>
    %198 = math.tanh %197 : vector<2x64xf32>
    %199 = vector.extract_strided_slice %196 {offsets = [0, 0], sizes = [2, 64], strides = [1, 1]} : vector<2x192xf32> to vector<2x64xf32>
    %200 = vector.extract_strided_slice %196 {offsets = [0, 64], sizes = [2, 64], strides = [1, 1]} : vector<2x192xf32> to vector<2x64xf32>
    %201 = vector.extract_strided_slice %196 {offsets = [0, 128], sizes = [2, 64], strides = [1, 1]} : vector<2x192xf32> to vector<2x64xf32>
    %202 = arith.mulf %200, %186 : vector<2x64xf32>
    %203 = arith.mulf %199, %198 : vector<2x64xf32>
    %204 = arith.addf %202, %203 : vector<2x64xf32>
    %205 = math.tanh %204 : vector<2x64xf32>
    %206 = arith.mulf %201, %205 : vector<2x64xf32>
    %207 = vector.extract_strided_slice %184 {offsets = [2, 0], sizes = [2, 256], strides = [1, 1]} : vector<16x256xf32> to vector<2x256xf32>
    %208 = arith.truncf %206 : vector<2x64xf32> to vector<2x64xbf16>
    %cst_47 = arith.constant dense<0.000000e+00> : vector<2x256xf32>
    %209 = tpu.matmul %208, %180, %cst_47 {dimension_numbers = #tpu.dot_dimension_numbers<[1], [0], [0], [1], [0, 0, 1, 1], [], []>} : vector<2x64xbf16>, vector<64x256xbf16>, vector<2x256xf32> -> vector<2x256xf32>
    %210 = arith.addf %207, %209 : vector<2x256xf32>
    %211 = vector.extract_strided_slice %210 {offsets = [0, 0], sizes = [2, 192], strides = [1, 1]} : vector<2x256xf32> to vector<2x192xf32>
    %212 = arith.negf %211 : vector<2x192xf32>
    %213 = math.exp %212 : vector<2x192xf32>
    %cst_48 = arith.constant 1.000000e+00 : f32
    %214 = vector.broadcast %cst_48 : f32 to vector<2x192xf32>
    %215 = arith.addf %214, %213 : vector<2x192xf32>
    %216 = arith.divf %214, %215 : vector<2x192xf32>
    %217 = vector.extract_strided_slice %210 {offsets = [0, 192], sizes = [2, 64], strides = [1, 1]} : vector<2x256xf32> to vector<2x64xf32>
    %218 = math.tanh %217 : vector<2x64xf32>
    %219 = vector.extract_strided_slice %216 {offsets = [0, 0], sizes = [2, 64], strides = [1, 1]} : vector<2x192xf32> to vector<2x64xf32>
    %220 = vector.extract_strided_slice %216 {offsets = [0, 64], sizes = [2, 64], strides = [1, 1]} : vector<2x192xf32> to vector<2x64xf32>
    %221 = vector.extract_strided_slice %216 {offsets = [0, 128], sizes = [2, 64], strides = [1, 1]} : vector<2x192xf32> to vector<2x64xf32>
    %222 = arith.mulf %220, %204 : vector<2x64xf32>
    %223 = arith.mulf %219, %218 : vector<2x64xf32>
    %224 = arith.addf %222, %223 : vector<2x64xf32>
    %225 = math.tanh %224 : vector<2x64xf32>
    %226 = arith.mulf %221, %225 : vector<2x64xf32>
    %227 = vector.extract_strided_slice %184 {offsets = [4, 0], sizes = [2, 256], strides = [1, 1]} : vector<16x256xf32> to vector<2x256xf32>
    %228 = arith.truncf %226 : vector<2x64xf32> to vector<2x64xbf16>
    %cst_49 = arith.constant dense<0.000000e+00> : vector<2x256xf32>
    %229 = tpu.matmul %228, %180, %cst_49 {dimension_numbers = #tpu.dot_dimension_numbers<[1], [0], [0], [1], [0, 0, 1, 1], [], []>} : vector<2x64xbf16>, vector<64x256xbf16>, vector<2x256xf32> -> vector<2x256xf32>
    %230 = arith.addf %227, %229 : vector<2x256xf32>
    %231 = vector.extract_strided_slice %230 {offsets = [0, 0], sizes = [2, 192], strides = [1, 1]} : vector<2x256xf32> to vector<2x192xf32>
    %232 = arith.negf %231 : vector<2x192xf32>
    %233 = math.exp %232 : vector<2x192xf32>
    %cst_50 = arith.constant 1.000000e+00 : f32
    %234 = vector.broadcast %cst_50 : f32 to vector<2x192xf32>
    %235 = arith.addf %234, %233 : vector<2x192xf32>
    %236 = arith.divf %234, %235 : vector<2x192xf32>
    %237 = vector.extract_strided_slice %230 {offsets = [0, 192], sizes = [2, 64], strides = [1, 1]} : vector<2x256xf32> to vector<2x64xf32>
    %238 = math.tanh %237 : vector<2x64xf32>
    %239 = vector.extract_strided_slice %236 {offsets = [0, 0], sizes = [2, 64], strides = [1, 1]} : vector<2x192xf32> to vector<2x64xf32>
    %240 = vector.extract_strided_slice %236 {offsets = [0, 64], sizes = [2, 64], strides = [1, 1]} : vector<2x192xf32> to vector<2x64xf32>
    %241 = vector.extract_strided_slice %236 {offsets = [0, 128], sizes = [2, 64], strides = [1, 1]} : vector<2x192xf32> to vector<2x64xf32>
    %242 = arith.mulf %240, %224 : vector<2x64xf32>
    %243 = arith.mulf %239, %238 : vector<2x64xf32>
    %244 = arith.addf %242, %243 : vector<2x64xf32>
    %245 = math.tanh %244 : vector<2x64xf32>
    %246 = arith.mulf %241, %245 : vector<2x64xf32>
    %247 = vector.extract_strided_slice %184 {offsets = [6, 0], sizes = [2, 256], strides = [1, 1]} : vector<16x256xf32> to vector<2x256xf32>
    %248 = arith.truncf %246 : vector<2x64xf32> to vector<2x64xbf16>
    %cst_51 = arith.constant dense<0.000000e+00> : vector<2x256xf32>
    %249 = tpu.matmul %248, %180, %cst_51 {dimension_numbers = #tpu.dot_dimension_numbers<[1], [0], [0], [1], [0, 0, 1, 1], [], []>} : vector<2x64xbf16>, vector<64x256xbf16>, vector<2x256xf32> -> vector<2x256xf32>
    %250 = arith.addf %247, %249 : vector<2x256xf32>
    %251 = vector.extract_strided_slice %250 {offsets = [0, 0], sizes = [2, 192], strides = [1, 1]} : vector<2x256xf32> to vector<2x192xf32>
    %252 = arith.negf %251 : vector<2x192xf32>
    %253 = math.exp %252 : vector<2x192xf32>
    %cst_52 = arith.constant 1.000000e+00 : f32
    %254 = vector.broadcast %cst_52 : f32 to vector<2x192xf32>
    %255 = arith.addf %254, %253 : vector<2x192xf32>
    %256 = arith.divf %254, %255 : vector<2x192xf32>
    %257 = vector.extract_strided_slice %250 {offsets = [0, 192], sizes = [2, 64], strides = [1, 1]} : vector<2x256xf32> to vector<2x64xf32>
    %258 = math.tanh %257 : vector<2x64xf32>
    %259 = vector.extract_strided_slice %256 {offsets = [0, 0], sizes = [2, 64], strides = [1, 1]} : vector<2x192xf32> to vector<2x64xf32>
    %260 = vector.extract_strided_slice %256 {offsets = [0, 64], sizes = [2, 64], strides = [1, 1]} : vector<2x192xf32> to vector<2x64xf32>
    %261 = vector.extract_strided_slice %256 {offsets = [0, 128], sizes = [2, 64], strides = [1, 1]} : vector<2x192xf32> to vector<2x64xf32>
    %262 = arith.mulf %260, %244 : vector<2x64xf32>
    %263 = arith.mulf %259, %258 : vector<2x64xf32>
    %264 = arith.addf %262, %263 : vector<2x64xf32>
    %265 = math.tanh %264 : vector<2x64xf32>
    %266 = arith.mulf %261, %265 : vector<2x64xf32>
    %267 = vector.extract_strided_slice %184 {offsets = [8, 0], sizes = [2, 256], strides = [1, 1]} : vector<16x256xf32> to vector<2x256xf32>
    %268 = arith.truncf %266 : vector<2x64xf32> to vector<2x64xbf16>
    %cst_53 = arith.constant dense<0.000000e+00> : vector<2x256xf32>
    %269 = tpu.matmul %268, %180, %cst_53 {dimension_numbers = #tpu.dot_dimension_numbers<[1], [0], [0], [1], [0, 0, 1, 1], [], []>} : vector<2x64xbf16>, vector<64x256xbf16>, vector<2x256xf32> -> vector<2x256xf32>
    %270 = arith.addf %267, %269 : vector<2x256xf32>
    %271 = vector.extract_strided_slice %270 {offsets = [0, 0], sizes = [2, 192], strides = [1, 1]} : vector<2x256xf32> to vector<2x192xf32>
    %272 = arith.negf %271 : vector<2x192xf32>
    %273 = math.exp %272 : vector<2x192xf32>
    %cst_54 = arith.constant 1.000000e+00 : f32
    %274 = vector.broadcast %cst_54 : f32 to vector<2x192xf32>
    %275 = arith.addf %274, %273 : vector<2x192xf32>
    %276 = arith.divf %274, %275 : vector<2x192xf32>
    %277 = vector.extract_strided_slice %270 {offsets = [0, 192], sizes = [2, 64], strides = [1, 1]} : vector<2x256xf32> to vector<2x64xf32>
    %278 = math.tanh %277 : vector<2x64xf32>
    %279 = vector.extract_strided_slice %276 {offsets = [0, 0], sizes = [2, 64], strides = [1, 1]} : vector<2x192xf32> to vector<2x64xf32>
    %280 = vector.extract_strided_slice %276 {offsets = [0, 64], sizes = [2, 64], strides = [1, 1]} : vector<2x192xf32> to vector<2x64xf32>
    %281 = vector.extract_strided_slice %276 {offsets = [0, 128], sizes = [2, 64], strides = [1, 1]} : vector<2x192xf32> to vector<2x64xf32>
    %282 = arith.mulf %280, %264 : vector<2x64xf32>
    %283 = arith.mulf %279, %278 : vector<2x64xf32>
    %284 = arith.addf %282, %283 : vector<2x64xf32>
    %285 = math.tanh %284 : vector<2x64xf32>
    %286 = arith.mulf %281, %285 : vector<2x64xf32>
    %287 = vector.extract_strided_slice %184 {offsets = [10, 0], sizes = [2, 256], strides = [1, 1]} : vector<16x256xf32> to vector<2x256xf32>
    %288 = arith.truncf %286 : vector<2x64xf32> to vector<2x64xbf16>
    %cst_55 = arith.constant dense<0.000000e+00> : vector<2x256xf32>
    %289 = tpu.matmul %288, %180, %cst_55 {dimension_numbers = #tpu.dot_dimension_numbers<[1], [0], [0], [1], [0, 0, 1, 1], [], []>} : vector<2x64xbf16>, vector<64x256xbf16>, vector<2x256xf32> -> vector<2x256xf32>
    %290 = arith.addf %287, %289 : vector<2x256xf32>
    %291 = vector.extract_strided_slice %290 {offsets = [0, 0], sizes = [2, 192], strides = [1, 1]} : vector<2x256xf32> to vector<2x192xf32>
    %292 = arith.negf %291 : vector<2x192xf32>
    %293 = math.exp %292 : vector<2x192xf32>
    %cst_56 = arith.constant 1.000000e+00 : f32
    %294 = vector.broadcast %cst_56 : f32 to vector<2x192xf32>
    %295 = arith.addf %294, %293 : vector<2x192xf32>
    %296 = arith.divf %294, %295 : vector<2x192xf32>
    %297 = vector.extract_strided_slice %290 {offsets = [0, 192], sizes = [2, 64], strides = [1, 1]} : vector<2x256xf32> to vector<2x64xf32>
    %298 = math.tanh %297 : vector<2x64xf32>
    %299 = vector.extract_strided_slice %296 {offsets = [0, 0], sizes = [2, 64], strides = [1, 1]} : vector<2x192xf32> to vector<2x64xf32>
    %300 = vector.extract_strided_slice %296 {offsets = [0, 64], sizes = [2, 64], strides = [1, 1]} : vector<2x192xf32> to vector<2x64xf32>
    %301 = vector.extract_strided_slice %296 {offsets = [0, 128], sizes = [2, 64], strides = [1, 1]} : vector<2x192xf32> to vector<2x64xf32>
    %302 = arith.mulf %300, %284 : vector<2x64xf32>
    %303 = arith.mulf %299, %298 : vector<2x64xf32>
    %304 = arith.addf %302, %303 : vector<2x64xf32>
    %305 = math.tanh %304 : vector<2x64xf32>
    %306 = arith.mulf %301, %305 : vector<2x64xf32>
    %307 = vector.extract_strided_slice %184 {offsets = [12, 0], sizes = [2, 256], strides = [1, 1]} : vector<16x256xf32> to vector<2x256xf32>
    %308 = arith.truncf %306 : vector<2x64xf32> to vector<2x64xbf16>
    %cst_57 = arith.constant dense<0.000000e+00> : vector<2x256xf32>
    %309 = tpu.matmul %308, %180, %cst_57 {dimension_numbers = #tpu.dot_dimension_numbers<[1], [0], [0], [1], [0, 0, 1, 1], [], []>} : vector<2x64xbf16>, vector<64x256xbf16>, vector<2x256xf32> -> vector<2x256xf32>
    %310 = arith.addf %307, %309 : vector<2x256xf32>
    %311 = vector.extract_strided_slice %310 {offsets = [0, 0], sizes = [2, 192], strides = [1, 1]} : vector<2x256xf32> to vector<2x192xf32>
    %312 = arith.negf %311 : vector<2x192xf32>
    %313 = math.exp %312 : vector<2x192xf32>
    %cst_58 = arith.constant 1.000000e+00 : f32
    %314 = vector.broadcast %cst_58 : f32 to vector<2x192xf32>
    %315 = arith.addf %314, %313 : vector<2x192xf32>
    %316 = arith.divf %314, %315 : vector<2x192xf32>
    %317 = vector.extract_strided_slice %310 {offsets = [0, 192], sizes = [2, 64], strides = [1, 1]} : vector<2x256xf32> to vector<2x64xf32>
    %318 = math.tanh %317 : vector<2x64xf32>
    %319 = vector.extract_strided_slice %316 {offsets = [0, 0], sizes = [2, 64], strides = [1, 1]} : vector<2x192xf32> to vector<2x64xf32>
    %320 = vector.extract_strided_slice %316 {offsets = [0, 64], sizes = [2, 64], strides = [1, 1]} : vector<2x192xf32> to vector<2x64xf32>
    %321 = vector.extract_strided_slice %316 {offsets = [0, 128], sizes = [2, 64], strides = [1, 1]} : vector<2x192xf32> to vector<2x64xf32>
    %322 = arith.mulf %320, %304 : vector<2x64xf32>
    %323 = arith.mulf %319, %318 : vector<2x64xf32>
    %324 = arith.addf %322, %323 : vector<2x64xf32>
    %325 = math.tanh %324 : vector<2x64xf32>
    %326 = arith.mulf %321, %325 : vector<2x64xf32>
    %327 = vector.extract_strided_slice %184 {offsets = [14, 0], sizes = [2, 256], strides = [1, 1]} : vector<16x256xf32> to vector<2x256xf32>
    %328 = arith.truncf %326 : vector<2x64xf32> to vector<2x64xbf16>
    %cst_59 = arith.constant dense<0.000000e+00> : vector<2x256xf32>
    %329 = tpu.matmul %328, %180, %cst_59 {dimension_numbers = #tpu.dot_dimension_numbers<[1], [0], [0], [1], [0, 0, 1, 1], [], []>} : vector<2x64xbf16>, vector<64x256xbf16>, vector<2x256xf32> -> vector<2x256xf32>
    %330 = arith.addf %327, %329 : vector<2x256xf32>
    %331 = vector.extract_strided_slice %330 {offsets = [0, 0], sizes = [2, 192], strides = [1, 1]} : vector<2x256xf32> to vector<2x192xf32>
    %332 = arith.negf %331 : vector<2x192xf32>
    %333 = math.exp %332 : vector<2x192xf32>
    %cst_60 = arith.constant 1.000000e+00 : f32
    %334 = vector.broadcast %cst_60 : f32 to vector<2x192xf32>
    %335 = arith.addf %334, %333 : vector<2x192xf32>
    %336 = arith.divf %334, %335 : vector<2x192xf32>
    %337 = vector.extract_strided_slice %330 {offsets = [0, 192], sizes = [2, 64], strides = [1, 1]} : vector<2x256xf32> to vector<2x64xf32>
    %338 = math.tanh %337 : vector<2x64xf32>
    %339 = vector.extract_strided_slice %336 {offsets = [0, 0], sizes = [2, 64], strides = [1, 1]} : vector<2x192xf32> to vector<2x64xf32>
    %340 = vector.extract_strided_slice %336 {offsets = [0, 64], sizes = [2, 64], strides = [1, 1]} : vector<2x192xf32> to vector<2x64xf32>
    %341 = vector.extract_strided_slice %336 {offsets = [0, 128], sizes = [2, 64], strides = [1, 1]} : vector<2x192xf32> to vector<2x64xf32>
    %342 = arith.mulf %340, %324 : vector<2x64xf32>
    %343 = arith.mulf %339, %338 : vector<2x64xf32>
    %344 = arith.addf %342, %343 : vector<2x64xf32>
    %345 = math.tanh %344 : vector<2x64xf32>
    %346 = arith.mulf %341, %345 : vector<2x64xf32>
    %347 = arith.truncf %346 : vector<2x64xf32> to vector<2x64xbf16>
    %c0_61 = arith.constant 0 : index
    %c0_62 = arith.constant 0 : index
    %348 = vector.load %arg8[%c0_61, %c0_62] : memref<64x8xbf16, #tpu.memory_space<vmem>>, vector<64x8xbf16>
    %cst_63 = arith.constant dense<0.000000e+00> : vector<2x8xf32>
    %349 = tpu.matmul %347, %348, %cst_63 {dimension_numbers = #tpu.dot_dimension_numbers<[1], [0], [0], [1], [0, 0, 1, 1], [], []>} : vector<2x64xbf16>, vector<64x8xbf16>, vector<2x8xf32> -> vector<2x8xf32>
    %c0_64 = arith.constant 0 : index
    %c0_65 = arith.constant 0 : index
    %350 = vector.load %arg9[%c0_64, %c0_65] : memref<1x8xf32, #tpu.memory_space<vmem>>, vector<1x8xf32>
    %351 = vector.broadcast %350 : vector<1x8xf32> to vector<2x8xf32>
    %352 = arith.addf %349, %351 : vector<2x8xf32>
    %c0_66 = arith.constant 0 : index
    %c0_67 = arith.constant 0 : index
    %353 = vector.load %arg10[%c0_66, %c0_67] : memref<2x8xf32, #tpu.memory_space<vmem>>, vector<2x8xf32>
    tpu.vector_store %arg10[%c0_66, %c0_67], %352 {strides = array<i32>} : memref<2x8xf32, #tpu.memory_space<vmem>>, vector<2x8xf32>,
    return
  }
  func.func @transform_0(%arg0: i32) -> (i32, i32) {
    %c0_i32 = arith.constant 0 : i32
    %c0_i32_0 = arith.constant 0 : i32
    %c0_i32_1 = arith.constant 0 : i32
    return %c0_i32, %c0_i32_0 : i32, i32
  }
  func.func @transform_1(%arg0: i32) -> (i32, i32) {
    %c0_i32 = arith.constant 0 : i32
    %c0_i32_0 = arith.constant 0 : i32
    %c0_i32_1 = arith.constant 0 : i32
    return %c0_i32, %c0_i32_0 : i32, i32
  }
  func.func @transform_2(%arg0: i32) -> (i32, i32) {
    %c0_i32 = arith.constant 0 : i32
    %c0_i32_0 = arith.constant 0 : i32
    %c0_i32_1 = arith.constant 0 : i32
    return %c0_i32, %c0_i32_0 : i32, i32
  }
  func.func @transform_3(%arg0: i32) -> (i32, i32) {
    %c0_i32 = arith.constant 0 : i32
    %c0_i32_0 = arith.constant 0 : i32
    %c0_i32_1 = arith.constant 0 : i32
    return %c0_i32, %c0_i32_0 : i32, i32
  }
  func.func @transform_4(%arg0: i32) -> (i32, i32) {
    %c0_i32 = arith.constant 0 : i32
    %c0_i32_0 = arith.constant 0 : i32
    %c0_i32_1 = arith.constant 0 : i32
    return %c0_i32, %c0_i32_0 : i32, i32
  }
  func.func @transform_5(%arg0: i32) -> (i32, i32) {
    %c0_i32 = arith.constant 0 : i32
    %c0_i32_0 = arith.constant 0 : i32
    %c0_i32_1 = arith.constant 0 : i32
    return %c0_i32, %c0_i32_0 : i32, i32
  }
  func.func @transform_6(%arg0: i32) -> (i32, i32) {
    %c0_i32 = arith.constant 0 : i32
    %c0_i32_0 = arith.constant 0 : i32
    %c0_i32_1 = arith.constant 0 : i32
    return %c0_i32, %c0_i32_0 : i32, i32
  }
  func.func @transform_7(%arg0: i32) -> (i32, i32) {
    %c0_i32 = arith.constant 0 : i32
    %c0_i32_0 = arith.constant 0 : i32
    %c0_i32_1 = arith.constant 0 : i32
    return %c0_i32, %c0_i32_0 : i32, i32
  }
  func.func @transform_8(%arg0: i32) -> (i32, i32) {
    %c0_i32 = arith.constant 0 : i32
    %c0_i32_0 = arith.constant 0 : i32
    %c0_i32_1 = arith.constant 0 : i32
    return %c0_i32, %c0_i32_0 : i32, i32
  }
  func.func @transform_9(%arg0: i32) -> (i32, i32) {
    %c0_i32 = arith.constant 0 : i32
    %c0_i32_0 = arith.constant 0 : i32
    %c0_i32_1 = arith.constant 0 : i32
    return %c0_i32, %c0_i32_0 : i32, i32
  }
}

</mosaic_0001>

<llo_original>
// kernel: lstm_forward.1
$region0: #{lstm_forward.1}
  #allocation0 [shape = 'u32[]', space=smem, size = 0x4, offset = 0x4, fixed_abs, tag = 'smem constant byte address 0x4 - core index']
  #allocation1 [shape = 'u32[144,128]{1,0:T(1,128)}', space=vmem, size = 0x12000, scoped, tag = 'internal scratch']
  #allocation2 [shape = 'f32[16,64]{1,0:T(8,128)}', space=vmem, size = 0x2000, scoped, tag = 'scratch operand']
  %s0 = inlined_call_operand.vmem [shape: bf16[16,16], index: 0, kind: input, shape index: {}]
  %s1 = inlined_call_operand.vmem [shape: bf16[16,256], index: 1, kind: input, shape index: {}]
  %s2 = inlined_call_operand.vmem [shape: bf16[64,256], index: 2, kind: input, shape index: {}]
  %s3 = inlined_call_operand.vmem [shape: f32[1,256], index: 3, kind: input, shape index: {}]
  %s4 = inlined_call_operand.hbm [shape: bf16[64,256], index: 4, kind: input, shape index: {}]
  %s5 = inlined_call_operand.hbm [shape: bf16[64,256], index: 5, kind: input, shape index: {}]
  %s6 = inlined_call_operand.hbm [shape: f32[1,256], index: 6, kind: input, shape index: {}]
  %s7 = inlined_call_operand.vmem [shape: bf16[64,8], index: 7, kind: input, shape index: {}]
  %s8 = inlined_call_operand.vmem [shape: f32[1,8], index: 8, kind: input, shape index: {}]
  %s9 = inlined_call_operand.hbm [shape: f32[2,8], index: 9, kind: output, shape index: {}]
  %s10 = sld [smem:[#allocation0]]
  $region58: #{lstm_forward.1} parent=0
    _
  %s12 = ssub.s32 1, %s10
  %s13 = scalar_select 0, %s12, %s10
  $region1: #{lstm_forward.1} parent=0
    #allocation3 [shape = 'u8[32768]{0}', space=vmem, size = 0x8000, scoped, tag = 'input window, operand 4, single buffered']
    #allocation4 [shape = 's32[1]{0}', space=sflag, size = 0x4, scoped, tag = 'scoped memory for lstm_forward.1']
    #allocation5 [shape = 's32[1]{0}', space=sflag, size = 0x4, scoped, tag = 'scoped memory for lstm_forward.1']
    #allocation6 [shape = 'u8[32768]{0}', space=vmem, size = 0x8000, scoped, tag = 'input window, operand 5, single buffered']
    #allocation7 [shape = 's32[1]{0}', space=sflag, size = 0x4, scoped, tag = 'scoped memory for lstm_forward.1']
    #allocation8 [shape = 'u8[1024]{0}', space=vmem, size = 0x400, scoped, tag = 'input window, operand 6, single buffered']
    #allocation9 [shape = 'u8[1024]{0}', space=vmem, size = 0x400, scoped, tag = 'output window, operand 0, single buffered']
    %14 = vsyncpa [#allocation4], 0
    %15 = vsyncpa [#allocation7], 0
    %16 = vsyncpa [#allocation5], 0
    // Predicated region
    $region2: #{lstm_forward.1} parent=1 // pred_check
      _
    $region3: #{lstm_forward.1} parent=1 // pred_check_branch
      %18 = sbr.rel (0) target = $region5
    $region4: #{lstm_forward.1} parent=1 // pred_region
      _
    $region5: #{lstm_forward.1} parent=1 // pred_fallthru
      _
    // Predicated region
    $region6: #{lstm_forward.1} parent=1 // pred_check
      _
    $region7: #{lstm_forward.1} parent=1 // pred_check_branch
      %20 = sbr.rel (0) target = $region9
    $region8: #{lstm_forward.1} parent=1 // pred_region
      _
    $region9: #{lstm_forward.1} parent=1 // pred_fallthru
      _
    // Predicated region
    $region10: #{lstm_forward.1} parent=1 // pred_check
      _
    $region11: #{lstm_forward.1} parent=1 // pred_check_branch
      %22 = sbr.rel (0) target = $region13
    $region12: #{lstm_forward.1} parent=1 // pred_region
      _
    $region13: #{lstm_forward.1} parent=1 // pred_fallthru
      _
    // Predicated region
    $region14: #{lstm_forward.1} parent=1 // pred_check
      _
    $region15: #{lstm_forward.1} parent=1 // pred_check_branch
      %24 = sbr.rel (0) target = $region17
    $region16: #{lstm_forward.1} parent=1 // pred_region
      _
    $region17: #{lstm_forward.1} parent=1 // pred_fallthru
      _
    // Predicated region
    $region18: #{lstm_forward.1} parent=1 // pred_check
      _
    $region19: #{lstm_forward.1} parent=1 // pred_check_branch
      %26 = sbr.rel (0) target = $region21
    $region20: #{lstm_forward.1} parent=1 // pred_region
      %s28 = ssub.s32 1024, 1024
      %29 = vsyncadd [#allocation4], %s28
      %s30 = sshll.u32 [#allocation3], 4
      %s31 = int_to_ptr.vmem [resolvable:$true] %s30
      %36 = dma.hbm_to_vmem [thread:$0]  %s4, 1024, %s31, [#allocation4], 128, 128, 8
    $region21: #{lstm_forward.1} parent=1 // pred_fallthru
      _
    // Predicated region
    $region22: #{lstm_forward.1} parent=1 // pred_check
      _
    $region23: #{lstm_forward.1} parent=1 // pred_check_branch
      %38 = sbr.rel (0) target = $region25
    $region24: #{lstm_forward.1} parent=1 // pred_region
      %s40 = ssub.s32 1024, 1024
      %41 = vsyncadd [#allocation7], %s40
      %s42 = sshll.u32 [#allocation6], 4
      %s43 = int_to_ptr.vmem [resolvable:$true] %s42
      %48 = dma.hbm_to_vmem [thread:$0]  %s5, 1024, %s43, [#allocation7], 128, 128, 8
    $region25: #{lstm_forward.1} parent=1 // pred_fallthru
      _
    // Predicated region
    $region26: #{lstm_forward.1} parent=1 // pred_check
      _
    $region27: #{lstm_forward.1} parent=1 // pred_check_branch
      %50 = sbr.rel (0) target = $region29
    $region28: #{lstm_forward.1} parent=1 // pred_region
      %s52 = ssub.s32 32, 32
      %53 = vsyncadd [#allocation7], %s52
      %s55 = sshll.u32 [#allocation8], 4
      %s56 = int_to_ptr.vmem [resolvable:$true] %s55
      %58 = dma.hbm_to_vmem [thread:$0]  %s6, 32, %s56, [#allocation7]
    $region29: #{lstm_forward.1} parent=1 // pred_fallthru
      _
    // Predicated region
    $region30: #{lstm_forward.1} parent=1 // pred_check
      _
    $region31: #{lstm_forward.1} parent=1 // pred_check_branch
      %60 = sbr.rel (0) target = $region33
    $region32: #{lstm_forward.1} parent=1 // pred_region
      _
    $region33: #{lstm_forward.1} parent=1 // pred_fallthru
      _
    // Predicated region
    $region34: #{lstm_forward.1} parent=1 // pred_check
      _
    $region35: #{lstm_forward.1} parent=1 // pred_check_branch
      %62 = sbr.rel (0) target = $region37
    $region36: #{lstm_forward.1} parent=1 // pred_region
      _
    $region37: #{lstm_forward.1} parent=1 // pred_fallthru
      _
    // Predicated region
    $region38: #{lstm_forward.1} parent=1 // pred_check
      _
    $region39: #{lstm_forward.1} parent=1 // pred_check_branch
      %64 = sbr.rel (0) target = $region41
    $region40: #{lstm_forward.1} parent=1 // pred_region
      %65 = dma.done [#allocation4], 1024
    $region41: #{lstm_forward.1} parent=1 // pred_fallthru
      _
    // Predicated region
    $region42: #{lstm_forward.1} parent=1 // pred_check
      _
    $region43: #{lstm_forward.1} parent=1 // pred_check_branch
      %67 = sbr.rel (0) target = $region45
    $region44: #{lstm_forward.1} parent=1 // pred_region
      %68 = dma.done [#allocation7], 1024
    $region45: #{lstm_forward.1} parent=1 // pred_fallthru
      _
    // Predicated region
    $region46: #{lstm_forward.1} parent=1 // pred_check
      _
    $region47: #{lstm_forward.1} parent=1 // pred_check_branch
      %70 = sbr.rel (0) target = $region49
    $region48: #{lstm_forward.1} parent=1 // pred_region
      %71 = dma.done [#allocation7], 32
    $region49: #{lstm_forward.1} parent=1 // pred_fallthru
      _
    %v73 = vld [vmem:[%s0] sm:$0xf]
    %v74 = vld [vmem:[%s0 + $0x4] sm:$0xf]
    %v75 = vld [vmem:[%s1] sm:$0xff]
    %v76 = vld [vmem:[%s1 + $0x8] sm:$0xff]
    %v77 = vld [vmem:[%s2] sm:$0xff]
    %v78 = vld [vmem:[%s2 + $0x8] sm:$0xff]
    %v79 = vld [vmem:[%s2 + $0x10] sm:$0xff]
    %v80 = vld [vmem:[%s2 + $0x18] sm:$0xff]
    %v81 = vld [vmem:[%s2 + $0x20] sm:$0xff]
    %v82 = vld [vmem:[%s2 + $0x28] sm:$0xff]
    %v83 = vld [vmem:[%s2 + $0x30] sm:$0xff]
    %v84 = vld [vmem:[%s2 + $0x38] sm:$0xff]
    %v85 = vld [vmem:[%s3] sm:$0x3]
    %v87 = vlaneseq
    %v88 = vshrl.u32 %v87, 7
    %v89 = vsub.s32 0, %v88
    %v90 = vrot.slane %v85, %v89
    %v91 = vlaneseq
    %v92 = vshrl.u32 %v91, 7
    %v93 = vsub.s32 1, %v92
    %v94 = vrot.slane %v85, %v93
    %v99 = vunpack.c.l.b16 %v73
    %v100 = vunpack.c.l.b16 %v74
    %v101 = vpack.c.b16 %v100, %v99
    %v104 = vunpack.c.l.b16 %v75
    %v105 = vunpack.c.h.b16 %v75
    %v106 = vunpack.c.l.b16 %v76
    %v107 = vunpack.c.h.b16 %v76
    %v108 = vpack.c.b16 %v106, %v104
    %v109 = vpack.c.b16 %v107, %v105
    %vm112 = vcmask 130048
    %v114 = vsel %vm112, %v101, 0
    %116 = vmatprep.subr.bf16.mxu0 %v109
    %117 = vmatpush1.bf16.msra.mxu0 %v108
    %118 = vmatprep.subr.bf16.mxu0 0
    %119 = vmatpush1.bf16.msra.mxu0 0
    %120 = vmatprep.subr.bf16.mxu0 0
    %121 = vmatpush1.bf16.msra.mxu0 0
    %122 = vmatprep.subr.bf16.mxu0 0
    %123 = vmatpush1.bf16.msra.mxu0 0
    %124 = vmatprep.subr.bf16.mxu0 0
    %125 = vmatpush1.bf16.msra.mxu0 0
    %126 = vmatprep.subr.bf16.mxu0 0
    %127 = vmatpush1.bf16.msra.mxu0 0
    %128 = vmatprep.subr.bf16.mxu0 0
    %129 = vmatpush1.bf16.msra.mxu0 0
    %130 = vmatprep.subr.bf16.mxu0 0
    %131 = vmatpush1.bf16.msra.mxu0 0
    %132 = vmatprep.subr.bf16.mxu0 0
    %133 = vmatpush1.bf16.msra.mxu0 0
    %134 = vmatprep.subr.bf16.mxu0 0
    %135 = vmatpush1.bf16.msra.mxu0 0
    %136 = vmatprep.subr.bf16.mxu0 0
    %137 = vmatpush1.bf16.msra.mxu0 0
    %138 = vmatprep.subr.bf16.mxu0 0
    %139 = vmatpush1.bf16.msra.mxu0 0
    %140 = vmatprep.subr.bf16.mxu0 0
    %141 = vmatpush1.bf16.msra.mxu0 0
    %142 = vmatprep.subr.bf16.mxu0 0
    %143 = vmatpush1.bf16.msra.mxu0 0
    %144 = vmatprep.subr.bf16.mxu0 0
    %145 = vmatpush1.bf16.msra.mxu0 0
    %146 = vmatprep.subr.bf16.mxu0 0
    %147 = vmatpush1.bf16.msra.mxu0 0
    %148 = vmatprep.mubr.bf16.mxu0 0
    %149 = vmatmul.mubr.bf16.gmra.mrb[0].mxu0 %v114
    %v150 = vpop.f32.mrb[0].mxu0
    %v151 = vadd.f32 %v90, %v150
    %v152 = vpop.f32.mrb[0].mxu0
    %v153 = vadd.f32 %v94, %v152
    %v154 = vpop.f32.mrb[0].mxu0
    %v155 = vadd.f32 %v90, %v154
    %v156 = vpop.f32.mrb[0].mxu0
    %v157 = vadd.f32 %v94, %v156
    %158 = vdwg.mxu0
    %v167 = vunpack.c.l.b16 %v77
    %v168 = vunpack.c.h.b16 %v77
    %v169 = vunpack.c.l.b16 %v78
    %v170 = vunpack.c.h.b16 %v78
    %v171 = vunpack.c.l.b16 %v79
    %v172 = vunpack.c.h.b16 %v79
    %v173 = vunpack.c.l.b16 %v80
    %v174 = vunpack.c.h.b16 %v80
    %v175 = vunpack.c.l.b16 %v81
    %v176 = vunpack.c.h.b16 %v81
    %v177 = vunpack.c.l.b16 %v82
    %v178 = vunpack.c.h.b16 %v82
    %v179 = vunpack.c.l.b16 %v83
    %v180 = vunpack.c.h.b16 %v83
    %v181 = vunpack.c.l.b16 %v84
    %v182 = vunpack.c.h.b16 %v84
    %v183 = vpack.c.b16 %v169, %v167
    %v184 = vpack.c.b16 %v170, %v168
    %v185 = vpack.c.b16 %v173, %v171
    %v186 = vpack.c.b16 %v174, %v172
    %v187 = vpack.c.b16 %v177, %v175
    %v188 = vpack.c.b16 %v178, %v176
    %v189 = vpack.c.b16 %v181, %v179
    %v190 = vpack.c.b16 %v182, %v180
    %vm199 = vcmask 523264
    %v201 = vsel %vm199, 0, 0
    %203 = vmatprep.subr.bf16.mxu0 %v184
    %204 = vmatpush1.bf16.msra.mxu0 %v183
    %205 = vmatprep.subr.bf16.mxu0 %v186
    %206 = vmatpush1.bf16.msra.mxu0 %v185
    %207 = vmatprep.subr.bf16.mxu0 %v188
    %208 = vmatpush1.bf16.msra.mxu0 %v187
    %209 = vmatprep.subr.bf16.mxu0 %v190
    %210 = vmatpush1.bf16.msra.mxu0 %v189
    %211 = vmatprep.subr.bf16.mxu0 0
    %212 = vmatpush1.bf16.msra.mxu0 0
    %213 = vmatprep.subr.bf16.mxu0 0
    %214 = vmatpush1.bf16.msra.mxu0 0
    %215 = vmatprep.subr.bf16.mxu0 0
    %216 = vmatpush1.bf16.msra.mxu0 0
    %217 = vmatprep.subr.bf16.mxu0 0
    %218 = vmatpush1.bf16.msra.mxu0 0
    %219 = vmatprep.subr.bf16.mxu0 0
    %220 = vmatpush1.bf16.msra.mxu0 0
    %221 = vmatprep.subr.bf16.mxu0 0
    %222 = vmatpush1.bf16.msra.mxu0 0
    %223 = vmatprep.subr.bf16.mxu0 0
    %224 = vmatpush1.bf16.msra.mxu0 0
    %225 = vmatprep.subr.bf16.mxu0 0
    %226 = vmatpush1.bf16.msra.mxu0 0
    %227 = vmatprep.subr.bf16.mxu0 0
    %228 = vmatpush1.bf16.msra.mxu0 0
    %229 = vmatprep.subr.bf16.mxu0 0
    %230 = vmatpush1.bf16.msra.mxu0 0
    %231 = vmatprep.subr.bf16.mxu0 0
    %232 = vmatpush1.bf16.msra.mxu0 0
    %233 = vmatprep.subr.bf16.mxu0 0
    %234 = vmatpush1.bf16.msra.mxu0 0
    %235 = vmatprep.mubr.bf16.mxu0 0
    %236 = vmatmul.mubr.bf16.gmra.mrb[0].mxu0 %v201
    %v237 = vpop.f32.mrb[0].mxu0
    %v238 = vadd.f32 0.0, %v237
    %v239 = vpop.f32.mrb[0].mxu0
    %v240 = vadd.f32 0.0, %v239
    %v241 = vpop.f32.mrb[0].mxu0
    %v242 = vpop.f32.mrb[0].mxu0
    %243 = vdwg.mxu0
    %v244 = vadd.f32 %v151, %v238
    %v245 = vadd.f32 %v153, %v240
    %v246 = vxor.u32 %v244, 2147483648
    %v247 = vxor.u32 %v245, 2147483648
    %v248 = vmul.f32 %v246, 1.442695
    %v249 = vpow.pop %v248
    %v250 = vmul.f32 %v247, 1.442695
    %v251 = vpow.pop %v250
    %v252 = vadd.f32 %v249, 1.0
    %v253 = vadd.f32 %v251, 1.0
    %v254 = vrcp.pop %v252
    %v255 = vmul.f32 1.0, %v254
    %v256 = vrcp.pop %v253
    %v257 = vmul.f32 1.0, %v256
    %v258 = vtanh.pop %v245
    %v259 = vmul.f32 %v255, 0.0
    %261 = vrot.lane.b32.xlu0 %v258, 64
    %v262 = vpop.permute.xlu0 %261
    %v264 = vmul.f32 %v255, %v262
    %266 = vrot.lane.b32.xlu0 %v264, 64
    %v267 = vpop.permute.xlu0 %266
    %v269 = vadd.f32 %v259, %v267
    %v270 = vtanh.pop %v269
    %272 = vrot.lane.b32.xlu0 %v270, 64
    %v273 = vpop.permute.xlu0 %272
    %v275 = vmul.f32 %v257, %v273
    %vm276 = vcmask 517120
    %277 = vst.msk [vmem:[#allocation2] sm:$0x3] %vm276, %v275
    %v278 = vpack.c.bf16 %v275, %v275
    %v280 = vsel %vm199, %v278, 0
    %282 = vmatprep.subr.bf16.mxu0 %v184
    %283 = vmatpush1.bf16.msra.mxu0 %v183
    %284 = vmatprep.subr.bf16.mxu0 %v186
    %285 = vmatpush1.bf16.msra.mxu0 %v185
    %286 = vmatprep.subr.bf16.mxu0 %v188
    %287 = vmatpush1.bf16.msra.mxu0 %v187
    %288 = vmatprep.subr.bf16.mxu0 %v190
    %289 = vmatpush1.bf16.msra.mxu0 %v189
    %290 = vmatprep.subr.bf16.mxu0 0
    %291 = vmatpush1.bf16.msra.mxu0 0
    %292 = vmatprep.subr.bf16.mxu0 0
    %293 = vmatpush1.bf16.msra.mxu0 0
    %294 = vmatprep.subr.bf16.mxu0 0
    %295 = vmatpush1.bf16.msra.mxu0 0
    %296 = vmatprep.subr.bf16.mxu0 0
    %297 = vmatpush1.bf16.msra.mxu0 0
    %298 = vmatprep.subr.bf16.mxu0 0
    %299 = vmatpush1.bf16.msra.mxu0 0
    %300 = vmatprep.subr.bf16.mxu0 0
    %301 = vmatpush1.bf16.msra.mxu0 0
    %302 = vmatprep.subr.bf16.mxu0 0
    %303 = vmatpush1.bf16.msra.mxu0 0
    %304 = vmatprep.subr.bf16.mxu0 0
    %305 = vmatpush1.bf16.msra.mxu0 0
    %306 = vmatprep.subr.bf16.mxu0 0
    %307 = vmatpush1.bf16.msra.mxu0 0
    %308 = vmatprep.subr.bf16.mxu0 0
    %309 = vmatpush1.bf16.msra.mxu0 0
    %310 = vmatprep.subr.bf16.mxu0 0
    %311 = vmatpush1.bf16.msra.mxu0 0
    %312 = vmatprep.subr.bf16.mxu0 0
    %313 = vmatpush1.bf16.msra.mxu0 0
    %314 = vmatprep.mubr.bf16.mxu0 0
    %315 = vmatmul.mubr.bf16.gmra.mrb[0].mxu0 %v280
    %v316 = vpop.f32.mrb[0].mxu0
    %v317 = vadd.f32 0.0, %v316
    %v318 = vpop.f32.mrb[0].mxu0
    %v319 = vadd.f32 0.0, %v318
    %v320 = vpop.f32.mrb[0].mxu0
    %v321 = vpop.f32.mrb[0].mxu0
    %322 = vdwg.mxu0
    %v325 = vrot.slane %v317, 6
    %v326 = vrot.slane %v319, 6
    %v329 = vadd.f32 %v151, %v325
    %v330 = vadd.f32 %v153, %v326
    %v331 = vxor.u32 %v329, 2147483648
    %v332 = vxor.u32 %v330, 2147483648
    %v333 = vmul.f32 %v331, 1.442695
    %v334 = vpow.pop %v333
    %v335 = vmul.f32 %v332, 1.442695
    %v336 = vpow.pop %v335
    %v337 = vadd.f32 %v334, 1.0
    %v338 = vadd.f32 %v336, 1.0
    %v339 = vrcp.pop %v337
    %v340 = vmul.f32 1.0, %v339
    %v341 = vrcp.pop %v338
    %v342 = vmul.f32 1.0, %v341
    %v343 = vtanh.pop %v330
    %v345 = vrot.slane %v269, 6
    %v347 = vmul.f32 %v340, %v345
    %349 = vrot.lane.b32.xlu0 %v343, 64
    %v350 = vpop.permute.xlu0 %349
    %v352 = vmul.f32 %v340, %v350
    %354 = vrot.lane.b32.xlu0 %v352, 64
    %v355 = vpop.permute.xlu0 %354
    %v357 = vadd.f32 %v347, %v355
    %v358 = vtanh.pop %v357
    %360 = vrot.lane.b32.xlu0 %v358, 64
    %v361 = vpop.permute.xlu0 %360
    %v363 = vmul.f32 %v342, %v361
    %vm364 = vcmask 519170
    %365 = vst.msk [vmem:[#allocation2] sm:$0xc] %vm364, %v363
    %v366 = vpack.c.bf16 %v363, %v363
    %v368 = vrot.slane %v366, 1
    %v370 = vsel %vm199, %v368, 0
    %372 = vmatprep.subr.bf16.mxu0 %v184
    %373 = vmatpush1.bf16.msra.mxu0 %v183
    %374 = vmatprep.subr.bf16.mxu0 %v186
    %375 = vmatpush1.bf16.msra.mxu0 %v185
    %376 = vmatprep.subr.bf16.mxu0 %v188
    %377 = vmatpush1.bf16.msra.mxu0 %v187
    %378 = vmatprep.subr.bf16.mxu0 %v190
    %379 = vmatpush1.bf16.msra.mxu0 %v189
    %380 = vmatprep.subr.bf16.mxu0 0
    %381 = vmatpush1.bf16.msra.mxu0 0
    %382 = vmatprep.subr.bf16.mxu0 0
    %383 = vmatpush1.bf16.msra.mxu0 0
    %384 = vmatprep.subr.bf16.mxu0 0
    %385 = vmatpush1.bf16.msra.mxu0 0
    %386 = vmatprep.subr.bf16.mxu0 0
    %387 = vmatpush1.bf16.msra.mxu0 0
    %388 = vmatprep.subr.bf16.mxu0 0
    %389 = vmatpush1.bf16.msra.mxu0 0
    %390 = vmatprep.subr.bf16.mxu0 0
    %391 = vmatpush1.bf16.msra.mxu0 0
    %392 = vmatprep.subr.bf16.mxu0 0
    %393 = vmatpush1.bf16.msra.mxu0 0
    %394 = vmatprep.subr.bf16.mxu0 0
    %395 = vmatpush1.bf16.msra.mxu0 0
    %396 = vmatprep.subr.bf16.mxu0 0
    %397 = vmatpush1.bf16.msra.mxu0 0
    %398 = vmatprep.subr.bf16.mxu0 0
    %399 = vmatpush1.bf16.msra.mxu0 0
    %400 = vmatprep.subr.bf16.mxu0 0
    %401 = vmatpush1.bf16.msra.mxu0 0
    %402 = vmatprep.subr.bf16.mxu0 0
    %403 = vmatpush1.bf16.msra.mxu0 0
    %404 = vmatprep.mubr.bf16.mxu0 0
    %405 = vmatmul.mubr.bf16.gmra.mrb[0].mxu0 %v370
    %v406 = vpop.f32.mrb[0].mxu0
    %v407 = vadd.f32 0.0, %v406
    %v408 = vpop.f32.mrb[0].mxu0
    %v409 = vadd.f32 0.0, %v408
    %v410 = vpop.f32.mrb[0].mxu0
    %v411 = vpop.f32.mrb[0].mxu0
    %412 = vdwg.mxu0
    %v415 = vrot.slane %v407, 4
    %v416 = vrot.slane %v409, 4
    %v419 = vadd.f32 %v151, %v415
    %v420 = vadd.f32 %v153, %v416
    %v421 = vxor.u32 %v419, 2147483648
    %v422 = vxor.u32 %v420, 2147483648
    %v423 = vmul.f32 %v421, 1.442695
    %v424 = vpow.pop %v423
    %v425 = vmul.f32 %v422, 1.442695
    %v426 = vpow.pop %v425
    %v427 = vadd.f32 %v424, 1.0
    %v428 = vadd.f32 %v426, 1.0
    %v429 = vrcp.pop %v427
    %v430 = vmul.f32 1.0, %v429
    %v431 = vrcp.pop %v428
    %v432 = vmul.f32 1.0, %v431
    %v433 = vtanh.pop %v420
    %v435 = vrot.slane %v357, 6
    %v437 = vmul.f32 %v430, %v435
    %439 = vrot.lane.b32.xlu0 %v433, 64
    %v440 = vpop.permute.xlu0 %439
    %v442 = vmul.f32 %v430, %v440
    %444 = vrot.lane.b32.xlu0 %v442, 64
    %v445 = vpop.permute.xlu0 %444
    %v447 = vadd.f32 %v437, %v445
    %v448 = vtanh.pop %v447
    %450 = vrot.lane.b32.xlu0 %v448, 64
    %v451 = vpop.permute.xlu0 %450
    %v453 = vmul.f32 %v432, %v451
    %vm454 = vcmask 521220
    %455 = vst.msk [vmem:[#allocation2] sm:$0x30] %vm454, %v453
    %v456 = vpack.c.bf16 %v453, %v453
    %v458 = vrot.slane %v456, 2
    %v460 = vsel %vm199, %v458, 0
    %462 = vmatprep.subr.bf16.mxu0 %v184
    %463 = vmatpush1.bf16.msra.mxu0 %v183
    %464 = vmatprep.subr.bf16.mxu0 %v186
    %465 = vmatpush1.bf16.msra.mxu0 %v185
    %466 = vmatprep.subr.bf16.mxu0 %v188
    %467 = vmatpush1.bf16.msra.mxu0 %v187
    %468 = vmatprep.subr.bf16.mxu0 %v190
    %469 = vmatpush1.bf16.msra.mxu0 %v189
    %470 = vmatprep.subr.bf16.mxu0 0
    %471 = vmatpush1.bf16.msra.mxu0 0
    %472 = vmatprep.subr.bf16.mxu0 0
    %473 = vmatpush1.bf16.msra.mxu0 0
    %474 = vmatprep.subr.bf16.mxu0 0
    %475 = vmatpush1.bf16.msra.mxu0 0
    %476 = vmatprep.subr.bf16.mxu0 0
    %477 = vmatpush1.bf16.msra.mxu0 0
    %478 = vmatprep.subr.bf16.mxu0 0
    %479 = vmatpush1.bf16.msra.mxu0 0
    %480 = vmatprep.subr.bf16.mxu0 0
    %481 = vmatpush1.bf16.msra.mxu0 0
    %482 = vmatprep.subr.bf16.mxu0 0
    %483 = vmatpush1.bf16.msra.mxu0 0
    %484 = vmatprep.subr.bf16.mxu0 0
    %485 = vmatpush1.bf16.msra.mxu0 0
    %486 = vmatprep.subr.bf16.mxu0 0
    %487 = vmatpush1.bf16.msra.mxu0 0
    %488 = vmatprep.subr.bf16.mxu0 0
    %489 = vmatpush1.bf16.msra.mxu0 0
    %490 = vmatprep.subr.bf16.mxu0 0
    %491 = vmatpush1.bf16.msra.mxu0 0
    %492 = vmatprep.subr.bf16.mxu0 0
    %493 = vmatpush1.bf16.msra.mxu0 0
    %494 = vmatprep.mubr.bf16.mxu0 0
    %495 = vmatmul.mubr.bf16.gmra.mrb[0].mxu0 %v460
    %v496 = vpop.f32.mrb[0].mxu0
    %v497 = vadd.f32 0.0, %v496
    %v498 = vpop.f32.mrb[0].mxu0
    %v499 = vadd.f32 0.0, %v498
    %v500 = vpop.f32.mrb[0].mxu0
    %v501 = vpop.f32.mrb[0].mxu0
    %502 = vdwg.mxu0
    %v505 = vrot.slane %v497, 2
    %v506 = vrot.slane %v499, 2
    %v509 = vadd.f32 %v151, %v505
    %v510 = vadd.f32 %v153, %v506
    %v511 = vxor.u32 %v509, 2147483648
    %v512 = vxor.u32 %v510, 2147483648
    %v513 = vmul.f32 %v511, 1.442695
    %v514 = vpow.pop %v513
    %v515 = vmul.f32 %v512, 1.442695
    %v516 = vpow.pop %v515
    %v517 = vadd.f32 %v514, 1.0
    %v518 = vadd.f32 %v516, 1.0
    %v519 = vrcp.pop %v517
    %v520 = vmul.f32 1.0, %v519
    %v521 = vrcp.pop %v518
    %v522 = vmul.f32 1.0, %v521
    %v523 = vtanh.pop %v510
    %v525 = vrot.slane %v447, 6
    %v527 = vmul.f32 %v520, %v525
    %529 = vrot.lane.b32.xlu0 %v523, 64
    %v530 = vpop.permute.xlu0 %529
    %v532 = vmul.f32 %v520, %v530
    %534 = vrot.lane.b32.xlu0 %v532, 64
    %v535 = vpop.permute.xlu0 %534
    %v537 = vadd.f32 %v527, %v535
    %v538 = vtanh.pop %v537
    %540 = vrot.lane.b32.xlu0 %v538, 64
    %v541 = vpop.permute.xlu0 %540
    %v543 = vmul.f32 %v522, %v541
    %vm544 = vcmask 523270
    %545 = vst.msk [vmem:[#allocation2] sm:$0xc0] %vm544, %v543
    %v546 = vpack.c.bf16 %v543, %v543
    %v548 = vrot.slane %v546, 3
    %v550 = vsel %vm199, %v548, 0
    %552 = vmatprep.subr.bf16.mxu0 %v184
    %553 = vmatpush1.bf16.msra.mxu0 %v183
    %554 = vmatprep.subr.bf16.mxu0 %v186
    %555 = vmatpush1.bf16.msra.mxu0 %v185
    %556 = vmatprep.subr.bf16.mxu0 %v188
    %557 = vmatpush1.bf16.msra.mxu0 %v187
    %558 = vmatprep.subr.bf16.mxu0 %v190
    %559 = vmatpush1.bf16.msra.mxu0 %v189
    %560 = vmatprep.subr.bf16.mxu0 0
    %561 = vmatpush1.bf16.msra.mxu0 0
    %562 = vmatprep.subr.bf16.mxu0 0
    %563 = vmatpush1.bf16.msra.mxu0 0
    %564 = vmatprep.subr.bf16.mxu0 0
    %565 = vmatpush1.bf16.msra.mxu0 0
    %566 = vmatprep.subr.bf16.mxu0 0
    %567 = vmatpush1.bf16.msra.mxu0 0
    %568 = vmatprep.subr.bf16.mxu0 0
    %569 = vmatpush1.bf16.msra.mxu0 0
    %570 = vmatprep.subr.bf16.mxu0 0
    %571 = vmatpush1.bf16.msra.mxu0 0
    %572 = vmatprep.subr.bf16.mxu0 0
    %573 = vmatpush1.bf16.msra.mxu0 0
    %574 = vmatprep.subr.bf16.mxu0 0
    %575 = vmatpush1.bf16.msra.mxu0 0
    %576 = vmatprep.subr.bf16.mxu0 0
    %577 = vmatpush1.bf16.msra.mxu0 0
    %578 = vmatprep.subr.bf16.mxu0 0
    %579 = vmatpush1.bf16.msra.mxu0 0
    %580 = vmatprep.subr.bf16.mxu0 0
    %581 = vmatpush1.bf16.msra.mxu0 0
    %582 = vmatprep.subr.bf16.mxu0 0
    %583 = vmatpush1.bf16.msra.mxu0 0
    %584 = vmatprep.mubr.bf16.mxu0 0
    %585 = vmatmul.mubr.bf16.gmra.mrb[0].mxu0 %v550
    %v586 = vpop.f32.mrb[0].mxu0
    %v587 = vadd.f32 0.0, %v586
    %v588 = vpop.f32.mrb[0].mxu0
    %v589 = vadd.f32 0.0, %v588
    %v590 = vpop.f32.mrb[0].mxu0
    %v591 = vpop.f32.mrb[0].mxu0
    %592 = vdwg.mxu0
    %v593 = vadd.f32 %v155, %v587
    %v594 = vadd.f32 %v157, %v589
    %v595 = vxor.u32 %v593, 2147483648
    %v596 = vxor.u32 %v594, 2147483648
    %v597 = vmul.f32 %v595, 1.442695
    %v598 = vpow.pop %v597
    %v599 = vmul.f32 %v596, 1.442695
    %v600 = vpow.pop %v599
    %v601 = vadd.f32 %v598, 1.0
    %v602 = vadd.f32 %v600, 1.0
    %v603 = vrcp.pop %v601
    %v604 = vmul.f32 1.0, %v603
    %v605 = vrcp.pop %v602
    %v606 = vmul.f32 1.0, %v605
    %v607 = vtanh.pop %v594
    %v609 = vrot.slane %v537, 6
    %v611 = vmul.f32 %v604, %v609
    %613 = vrot.lane.b32.xlu0 %v607, 64
    %v614 = vpop.permute.xlu0 %613
    %v616 = vmul.f32 %v604, %v614
    %618 = vrot.lane.b32.xlu0 %v616, 64
    %v619 = vpop.permute.xlu0 %618
    %v621 = vadd.f32 %v611, %v619
    %v622 = vtanh.pop %v621
    %624 = vrot.lane.b32.xlu0 %v622, 64
    %v625 = vpop.permute.xlu0 %624
    %v627 = vmul.f32 %v606, %v625
    %628 = vst.msk [vmem:[#allocation2 + $0x8] sm:$0x3] %vm276, %v627
    %v629 = vpack.c.bf16 %v627, %v627
    %v631 = vsel %vm199, %v629, 0
    %633 = vmatprep.subr.bf16.mxu0 %v184
    %634 = vmatpush1.bf16.msra.mxu0 %v183
    %635 = vmatprep.subr.bf16.mxu0 %v186
    %636 = vmatpush1.bf16.msra.mxu0 %v185
    %637 = vmatprep.subr.bf16.mxu0 %v188
    %638 = vmatpush1.bf16.msra.mxu0 %v187
    %639 = vmatprep.subr.bf16.mxu0 %v190
    %640 = vmatpush1.bf16.msra.mxu0 %v189
    %641 = vmatprep.subr.bf16.mxu0 0
    %642 = vmatpush1.bf16.msra.mxu0 0
    %643 = vmatprep.subr.bf16.mxu0 0
    %644 = vmatpush1.bf16.msra.mxu0 0
    %645 = vmatprep.subr.bf16.mxu0 0
    %646 = vmatpush1.bf16.msra.mxu0 0
    %647 = vmatprep.subr.bf16.mxu0 0
    %648 = vmatpush1.bf16.msra.mxu0 0
    %649 = vmatprep.subr.bf16.mxu0 0
    %650 = vmatpush1.bf16.msra.mxu0 0
    %651 = vmatprep.subr.bf16.mxu0 0
    %652 = vmatpush1.bf16.msra.mxu0 0
    %653 = vmatprep.subr.bf16.mxu0 0
    %654 = vmatpush1.bf16.msra.mxu0 0
    %655 = vmatprep.subr.bf16.mxu0 0
    %656 = vmatpush1.bf16.msra.mxu0 0
    %657 = vmatprep.subr.bf16.mxu0 0
    %658 = vmatpush1.bf16.msra.mxu0 0
    %659 = vmatprep.subr.bf16.mxu0 0
    %660 = vmatpush1.bf16.msra.mxu0 0
    %661 = vmatprep.subr.bf16.mxu0 0
    %662 = vmatpush1.bf16.msra.mxu0 0
    %663 = vmatprep.subr.bf16.mxu0 0
    %664 = vmatpush1.bf16.msra.mxu0 0
    %665 = vmatprep.mubr.bf16.mxu0 0
    %666 = vmatmul.mubr.bf16.gmra.mrb[0].mxu0 %v631
    %v667 = vpop.f32.mrb[0].mxu0
    %v668 = vadd.f32 0.0, %v667
    %v669 = vpop.f32.mrb[0].mxu0
    %v670 = vadd.f32 0.0, %v669
    %v671 = vpop.f32.mrb[0].mxu0
    %v672 = vpop.f32.mrb[0].mxu0
    %673 = vdwg.mxu0
    %v676 = vrot.slane %v668, 6
    %v677 = vrot.slane %v670, 6
    %v680 = vadd.f32 %v155, %v676
    %v681 = vadd.f32 %v157, %v677
    %v682 = vxor.u32 %v680, 2147483648
    %v683 = vxor.u32 %v681, 2147483648
    %v684 = vmul.f32 %v682, 1.442695
    %v685 = vpow.pop %v684
    %v686 = vmul.f32 %v683, 1.442695
    %v687 = vpow.pop %v686
    %v688 = vadd.f32 %v685, 1.0
    %v689 = vadd.f32 %v687, 1.0
    %v690 = vrcp.pop %v688
    %v691 = vmul.f32 1.0, %v690
    %v692 = vrcp.pop %v689
    %v693 = vmul.f32 1.0, %v692
    %v694 = vtanh.pop %v681
    %v696 = vrot.slane %v621, 6
    %v698 = vmul.f32 %v691, %v696
    %700 = vrot.lane.b32.xlu0 %v694, 64
    %v701 = vpop.permute.xlu0 %700
    %v703 = vmul.f32 %v691, %v701
    %705 = vrot.lane.b32.xlu0 %v703, 64
    %v706 = vpop.permute.xlu0 %705
    %v708 = vadd.f32 %v698, %v706
    %v709 = vtanh.pop %v708
    %711 = vrot.lane.b32.xlu0 %v709, 64
    %v712 = vpop.permute.xlu0 %711
    %v714 = vmul.f32 %v693, %v712
    %715 = vst.msk [vmem:[#allocation2 + $0x8] sm:$0xc] %vm364, %v714
    %v716 = vpack.c.bf16 %v714, %v714
    %v718 = vrot.slane %v716, 1
    %v720 = vsel %vm199, %v718, 0
    %722 = vmatprep.subr.bf16.mxu0 %v184
    %723 = vmatpush1.bf16.msra.mxu0 %v183
    %724 = vmatprep.subr.bf16.mxu0 %v186
    %725 = vmatpush1.bf16.msra.mxu0 %v185
    %726 = vmatprep.subr.bf16.mxu0 %v188
    %727 = vmatpush1.bf16.msra.mxu0 %v187
    %728 = vmatprep.subr.bf16.mxu0 %v190
    %729 = vmatpush1.bf16.msra.mxu0 %v189
    %730 = vmatprep.subr.bf16.mxu0 0
    %731 = vmatpush1.bf16.msra.mxu0 0
    %732 = vmatprep.subr.bf16.mxu0 0
    %733 = vmatpush1.bf16.msra.mxu0 0
    %734 = vmatprep.subr.bf16.mxu0 0
    %735 = vmatpush1.bf16.msra.mxu0 0
    %736 = vmatprep.subr.bf16.mxu0 0
    %737 = vmatpush1.bf16.msra.mxu0 0
    %738 = vmatprep.subr.bf16.mxu0 0
    %739 = vmatpush1.bf16.msra.mxu0 0
    %740 = vmatprep.subr.bf16.mxu0 0
    %741 = vmatpush1.bf16.msra.mxu0 0
    %742 = vmatprep.subr.bf16.mxu0 0
    %743 = vmatpush1.bf16.msra.mxu0 0
    %744 = vmatprep.subr.bf16.mxu0 0
    %745 = vmatpush1.bf16.msra.mxu0 0
    %746 = vmatprep.subr.bf16.mxu0 0
    %747 = vmatpush1.bf16.msra.mxu0 0
    %748 = vmatprep.subr.bf16.mxu0 0
    %749 = vmatpush1.bf16.msra.mxu0 0
    %750 = vmatprep.subr.bf16.mxu0 0
    %751 = vmatpush1.bf16.msra.mxu0 0
    %752 = vmatprep.subr.bf16.mxu0 0
    %753 = vmatpush1.bf16.msra.mxu0 0
    %754 = vmatprep.mubr.bf16.mxu0 0
    %755 = vmatmul.mubr.bf16.gmra.mrb[0].mxu0 %v720
    %v756 = vpop.f32.mrb[0].mxu0
    %v757 = vadd.f32 0.0, %v756
    %v758 = vpop.f32.mrb[0].mxu0
    %v759 = vadd.f32 0.0, %v758
    %v760 = vpop.f32.mrb[0].mxu0
    %v761 = vpop.f32.mrb[0].mxu0
    %762 = vdwg.mxu0
    %v765 = vrot.slane %v757, 4
    %v766 = vrot.slane %v759, 4
    %v769 = vadd.f32 %v155, %v765
    %v770 = vadd.f32 %v157, %v766
    %v771 = vxor.u32 %v769, 2147483648
    %v772 = vxor.u32 %v770, 2147483648
    %v773 = vmul.f32 %v771, 1.442695
    %v774 = vpow.pop %v773
    %v775 = vmul.f32 %v772, 1.442695
    %v776 = vpow.pop %v775
    %v777 = vadd.f32 %v774, 1.0
    %v778 = vadd.f32 %v776, 1.0
    %v779 = vrcp.pop %v777
    %v780 = vmul.f32 1.0, %v779
    %v781 = vrcp.pop %v778
    %v782 = vmul.f32 1.0, %v781
    %v783 = vtanh.pop %v770
    %v785 = vrot.slane %v708, 6
    %v787 = vmul.f32 %v780, %v785
    %789 = vrot.lane.b32.xlu0 %v783, 64
    %v790 = vpop.permute.xlu0 %789
    %v792 = vmul.f32 %v780, %v790
    %794 = vrot.lane.b32.xlu0 %v792, 64
    %v795 = vpop.permute.xlu0 %794
    %v797 = vadd.f32 %v787, %v795
    %v798 = vtanh.pop %v797
    %800 = vrot.lane.b32.xlu0 %v798, 64
    %v801 = vpop.permute.xlu0 %800
    %v803 = vmul.f32 %v782, %v801
    %804 = vst.msk [vmem:[#allocation2 + $0x8] sm:$0x30] %vm454, %v803
    %v805 = vpack.c.bf16 %v803, %v803
    %v807 = vrot.slane %v805, 2
    %v809 = vsel %vm199, %v807, 0
    %811 = vmatprep.subr.bf16.mxu0 %v184
    %812 = vmatpush1.bf16.msra.mxu0 %v183
    %813 = vmatprep.subr.bf16.mxu0 %v186
    %814 = vmatpush1.bf16.msra.mxu0 %v185
    %815 = vmatprep.subr.bf16.mxu0 %v188
    %816 = vmatpush1.bf16.msra.mxu0 %v187
    %817 = vmatprep.subr.bf16.mxu0 %v190
    %818 = vmatpush1.bf16.msra.mxu0 %v189
    %819 = vmatprep.subr.bf16.mxu0 0
    %820 = vmatpush1.bf16.msra.mxu0 0
    %821 = vmatprep.subr.bf16.mxu0 0
    %822 = vmatpush1.bf16.msra.mxu0 0
    %823 = vmatprep.subr.bf16.mxu0 0
    %824 = vmatpush1.bf16.msra.mxu0 0
    %825 = vmatprep.subr.bf16.mxu0 0
    %826 = vmatpush1.bf16.msra.mxu0 0
    %827 = vmatprep.subr.bf16.mxu0 0
    %828 = vmatpush1.bf16.msra.mxu0 0
    %829 = vmatprep.subr.bf16.mxu0 0
    %830 = vmatpush1.bf16.msra.mxu0 0
    %831 = vmatprep.subr.bf16.mxu0 0
    %832 = vmatpush1.bf16.msra.mxu0 0
    %833 = vmatprep.subr.bf16.mxu0 0
    %834 = vmatpush1.bf16.msra.mxu0 0
    %835 = vmatprep.subr.bf16.mxu0 0
    %836 = vmatpush1.bf16.msra.mxu0 0
    %837 = vmatprep.subr.bf16.mxu0 0
    %838 = vmatpush1.bf16.msra.mxu0 0
    %839 = vmatprep.subr.bf16.mxu0 0
    %840 = vmatpush1.bf16.msra.mxu0 0
    %841 = vmatprep.subr.bf16.mxu0 0
    %842 = vmatpush1.bf16.msra.mxu0 0
    %843 = vmatprep.mubr.bf16.mxu0 0
    %844 = vmatmul.mubr.bf16.gmra.mrb[0].mxu0 %v809
    %v845 = vpop.f32.mrb[0].mxu0
    %v846 = vadd.f32 0.0, %v845
    %v847 = vpop.f32.mrb[0].mxu0
    %v848 = vadd.f32 0.0, %v847
    %v849 = vpop.f32.mrb[0].mxu0
    %v850 = vpop.f32.mrb[0].mxu0
    %851 = vdwg.mxu0
    %v854 = vrot.slane %v846, 2
    %v855 = vrot.slane %v848, 2
    %v858 = vadd.f32 %v155, %v854
    %v859 = vadd.f32 %v157, %v855
    %v860 = vxor.u32 %v858, 2147483648
    %v861 = vxor.u32 %v859, 2147483648
    %v862 = vmul.f32 %v860, 1.442695
    %v863 = vpow.pop %v862
    %v864 = vmul.f32 %v861, 1.442695
    %v865 = vpow.pop %v864
    %v866 = vadd.f32 %v863, 1.0
    %v867 = vadd.f32 %v865, 1.0
    %v868 = vrcp.pop %v866
    %v869 = vmul.f32 1.0, %v868
    %v870 = vrcp.pop %v867
    %v871 = vmul.f32 1.0, %v870
    %v872 = vtanh.pop %v859
    %v874 = vrot.slane %v797, 6
    %v876 = vmul.f32 %v869, %v874
    %878 = vrot.lane.b32.xlu0 %v872, 64
    %v879 = vpop.permute.xlu0 %878
    %v881 = vmul.f32 %v869, %v879
    %883 = vrot.lane.b32.xlu0 %v881, 64
    %v884 = vpop.permute.xlu0 %883
    %v886 = vadd.f32 %v876, %v884
    %v887 = vtanh.pop %v886
    %889 = vrot.lane.b32.xlu0 %v887, 64
    %v890 = vpop.permute.xlu0 %889
    %v892 = vmul.f32 %v871, %v890
    %893 = vst.msk [vmem:[#allocation2 + $0x8] sm:$0xc0] %vm544, %v892
    %v894 = vld [vmem:[#allocation2] sm:$0xff]
    %v895 = vld [vmem:[#allocation2 + $0x8] sm:$0xff]
    %v896 = vpack.c.bf16 %v895, %v894
    %v897 = vld [vmem:[#allocation3] sm:$0xff]
    %v898 = vld [vmem:[#allocation3 + $0x8] sm:$0xff]
    %v899 = vld [vmem:[#allocation3 + $0x10] sm:$0xff]
    %v900 = vld [vmem:[#allocation3 + $0x18] sm:$0xff]
    %v901 = vld [vmem:[#allocation3 + $0x20] sm:$0xff]
    %v902 = vld [vmem:[#allocation3 + $0x28] sm:$0xff]
    %v903 = vld [vmem:[#allocation3 + $0x30] sm:$0xff]
    %v904 = vld [vmem:[#allocation3 + $0x38] sm:$0xff]
    %v905 = vld [vmem:[#allocation6] sm:$0xff]
    %v906 = vld [vmem:[#allocation6 + $0x8] sm:$0xff]
    %v907 = vld [vmem:[#allocation6 + $0x10] sm:$0xff]
    %v908 = vld [vmem:[#allocation6 + $0x18] sm:$0xff]
    %v909 = vld [vmem:[#allocation6 + $0x20] sm:$0xff]
    %v910 = vld [vmem:[#allocation6 + $0x28] sm:$0xff]
    %v911 = vld [vmem:[#allocation6 + $0x30] sm:$0xff]
    %v912 = vld [vmem:[#allocation6 + $0x38] sm:$0xff]
    %v913 = vld [vmem:[#allocation8] sm:$0x3]
    %v915 = vlaneseq
    %v916 = vshrl.u32 %v915, 7
    %v917 = vsub.s32 0, %v916
    %v918 = vrot.slane %v913, %v917
    %v919 = vlaneseq
    %v920 = vshrl.u32 %v919, 7
    %v921 = vsub.s32 1, %v920
    %v922 = vrot.slane %v913, %v921
    %v933 = vunpack.c.l.b16 %v897
    %v934 = vunpack.c.h.b16 %v897
    %v935 = vunpack.c.l.b16 %v898
    %v936 = vunpack.c.h.b16 %v898
    %v937 = vunpack.c.l.b16 %v899
    %v938 = vunpack.c.h.b16 %v899
    %v939 = vunpack.c.l.b16 %v900
    %v940 = vunpack.c.h.b16 %v900
    %v941 = vunpack.c.l.b16 %v901
    %v942 = vunpack.c.h.b16 %v901
    %v943 = vunpack.c.l.b16 %v902
    %v944 = vunpack.c.h.b16 %v902
    %v945 = vunpack.c.l.b16 %v903
    %v946 = vunpack.c.h.b16 %v903
    %v947 = vunpack.c.l.b16 %v904
    %v948 = vunpack.c.h.b16 %v904
    %v949 = vpack.c.b16 %v935, %v933
    %v950 = vpack.c.b16 %v936, %v934
    %v951 = vpack.c.b16 %v939, %v937
    %v952 = vpack.c.b16 %v940, %v938
    %v953 = vpack.c.b16 %v943, %v941
    %v954 = vpack.c.b16 %v944, %v942
    %v955 = vpack.c.b16 %v947, %v945
    %v956 = vpack.c.b16 %v948, %v946
    %v966 = vsel %vm199, %v896, 0
    %968 = vmatprep.subr.bf16.mxu0 %v950
    %969 = vmatpush1.bf16.msra.mxu0 %v949
    %970 = vmatprep.subr.bf16.mxu0 %v952
    %971 = vmatpush1.bf16.msra.mxu0 %v951
    %972 = vmatprep.subr.bf16.mxu0 %v954
    %973 = vmatpush1.bf16.msra.mxu0 %v953
    %974 = vmatprep.subr.bf16.mxu0 %v956
    %975 = vmatpush1.bf16.msra.mxu0 %v955
    %976 = vmatprep.subr.bf16.mxu0 0
    %977 = vmatpush1.bf16.msra.mxu0 0
    %978 = vmatprep.subr.bf16.mxu0 0
    %979 = vmatpush1.bf16.msra.mxu0 0
    %980 = vmatprep.subr.bf16.mxu0 0
    %981 = vmatpush1.bf16.msra.mxu0 0
    %982 = vmatprep.subr.bf16.mxu0 0
    %983 = vmatpush1.bf16.msra.mxu0 0
    %984 = vmatprep.subr.bf16.mxu0 0
    %985 = vmatpush1.bf16.msra.mxu0 0
    %986 = vmatprep.subr.bf16.mxu0 0
    %987 = vmatpush1.bf16.msra.mxu0 0
    %988 = vmatprep.subr.bf16.mxu0 0
    %989 = vmatpush1.bf16.msra.mxu0 0
    %990 = vmatprep.subr.bf16.mxu0 0
    %991 = vmatpush1.bf16.msra.mxu0 0
    %992 = vmatprep.subr.bf16.mxu0 0
    %993 = vmatpush1.bf16.msra.mxu0 0
    %994 = vmatprep.subr.bf16.mxu0 0
    %995 = vmatpush1.bf16.msra.mxu0 0
    %996 = vmatprep.subr.bf16.mxu0 0
    %997 = vmatpush1.bf16.msra.mxu0 0
    %998 = vmatprep.subr.bf16.mxu0 0
    %999 = vmatpush1.bf16.msra.mxu0 0
    %1000 = vmatprep.mubr.bf16.mxu0 0
    %1001 = vmatmul.mubr.bf16.gmra.mrb[0].mxu0 %v966
    %v1002 = vpop.f32.mrb[0].mxu0
    %v1003 = vadd.f32 %v918, %v1002
    %v1004 = vpop.f32.mrb[0].mxu0
    %v1005 = vadd.f32 %v922, %v1004
    %v1006 = vpop.f32.mrb[0].mxu0
    %v1007 = vadd.f32 %v918, %v1006
    %v1008 = vpop.f32.mrb[0].mxu0
    %v1009 = vadd.f32 %v922, %v1008
    %1010 = vdwg.mxu0
    %v1019 = vunpack.c.l.b16 %v905
    %v1020 = vunpack.c.h.b16 %v905
    %v1021 = vunpack.c.l.b16 %v906
    %v1022 = vunpack.c.h.b16 %v906
    %v1023 = vunpack.c.l.b16 %v907
    %v1024 = vunpack.c.h.b16 %v907
    %v1025 = vunpack.c.l.b16 %v908
    %v1026 = vunpack.c.h.b16 %v908
    %v1027 = vunpack.c.l.b16 %v909
    %v1028 = vunpack.c.h.b16 %v909
    %v1029 = vunpack.c.l.b16 %v910
    %v1030 = vunpack.c.h.b16 %v910
    %v1031 = vunpack.c.l.b16 %v911
    %v1032 = vunpack.c.h.b16 %v911
    %v1033 = vunpack.c.l.b16 %v912
    %v1034 = vunpack.c.h.b16 %v912
    %v1035 = vpack.c.b16 %v1021, %v1019
    %v1036 = vpack.c.b16 %v1022, %v1020
    %v1037 = vpack.c.b16 %v1025, %v1023
    %v1038 = vpack.c.b16 %v1026, %v1024
    %v1039 = vpack.c.b16 %v1029, %v1027
    %v1040 = vpack.c.b16 %v1030, %v1028
    %v1041 = vpack.c.b16 %v1033, %v1031
    %v1042 = vpack.c.b16 %v1034, %v1032
    %1051 = vmatprep.subr.bf16.mxu0 %v1036
    %1052 = vmatpush1.bf16.msra.mxu0 %v1035
    %1053 = vmatprep.subr.bf16.mxu0 %v1038
    %1054 = vmatpush1.bf16.msra.mxu0 %v1037
    %1055 = vmatprep.subr.bf16.mxu0 %v1040
    %1056 = vmatpush1.bf16.msra.mxu0 %v1039
    %1057 = vmatprep.subr.bf16.mxu0 %v1042
    %1058 = vmatpush1.bf16.msra.mxu0 %v1041
    %1059 = vmatprep.subr.bf16.mxu0 0
    %1060 = vmatpush1.bf16.msra.mxu0 0
    %1061 = vmatprep.subr.bf16.mxu0 0
    %1062 = vmatpush1.bf16.msra.mxu0 0
    %1063 = vmatprep.subr.bf16.mxu0 0
    %1064 = vmatpush1.bf16.msra.mxu0 0
    %1065 = vmatprep.subr.bf16.mxu0 0
    %1066 = vmatpush1.bf16.msra.mxu0 0
    %1067 = vmatprep.subr.bf16.mxu0 0
    %1068 = vmatpush1.bf16.msra.mxu0 0
    %1069 = vmatprep.subr.bf16.mxu0 0
    %1070 = vmatpush1.bf16.msra.mxu0 0
    %1071 = vmatprep.subr.bf16.mxu0 0
    %1072 = vmatpush1.bf16.msra.mxu0 0
    %1073 = vmatprep.subr.bf16.mxu0 0
    %1074 = vmatpush1.bf16.msra.mxu0 0
    %1075 = vmatprep.subr.bf16.mxu0 0
    %1076 = vmatpush1.bf16.msra.mxu0 0
    %1077 = vmatprep.subr.bf16.mxu0 0
    %1078 = vmatpush1.bf16.msra.mxu0 0
    %1079 = vmatprep.subr.bf16.mxu0 0
    %1080 = vmatpush1.bf16.msra.mxu0 0
    %1081 = vmatprep.subr.bf16.mxu0 0
    %1082 = vmatpush1.bf16.msra.mxu0 0
    %1083 = vmatprep.mubr.bf16.mxu0 0
    %1084 = vmatmul.mubr.bf16.gmra.mrb[0].mxu0 %v201
    %v1085 = vpop.f32.mrb[0].mxu0
    %v1086 = vadd.f32 0.0, %v1085
    %v1087 = vpop.f32.mrb[0].mxu0
    %v1088 = vadd.f32 0.0, %v1087
    %v1089 = vpop.f32.mrb[0].mxu0
    %v1090 = vpop.f32.mrb[0].mxu0
    %1091 = vdwg.mxu0
    %v1092 = vadd.f32 %v1003, %v1086
    %v1093 = vadd.f32 %v1005, %v1088
    %v1094 = vxor.u32 %v1092, 2147483648
    %v1095 = vxor.u32 %v1093, 2147483648
    %v1096 = vmul.f32 %v1094, 1.442695
    %v1097 = vpow.pop %v1096
    %v1098 = vmul.f32 %v1095, 1.442695
    %v1099 = vpow.pop %v1098
    %v1100 = vadd.f32 %v1097, 1.0
    %v1101 = vadd.f32 %v1099, 1.0
    %v1102 = vrcp.pop %v1100
    %v1103 = vmul.f32 1.0, %v1102
    %v1104 = vrcp.pop %v1101
    %v1105 = vmul.f32 1.0, %v1104
    %v1106 = vtanh.pop %v1093
    %v1107 = vmul.f32 %v1103, 0.0
    %1109 = vrot.lane.b32.xlu0 %v1106, 64
    %v1110 = vpop.permute.xlu0 %1109
    %v1112 = vmul.f32 %v1103, %v1110
    %1114 = vrot.lane.b32.xlu0 %v1112, 64
    %v1115 = vpop.permute.xlu0 %1114
    %v1117 = vadd.f32 %v1107, %v1115
    %v1118 = vtanh.pop %v1117
    %1120 = vrot.lane.b32.xlu0 %v1118, 64
    %v1121 = vpop.permute.xlu0 %1120
    %v1123 = vmul.f32 %v1105, %v1121
    %v1124 = vpack.c.bf16 %v1123, %v1123
    %v1126 = vsel %vm199, %v1124, 0
    %1128 = vmatprep.subr.bf16.mxu0 %v1036
    %1129 = vmatpush1.bf16.msra.mxu0 %v1035
    %1130 = vmatprep.subr.bf16.mxu0 %v1038
    %1131 = vmatpush1.bf16.msra.mxu0 %v1037
    %1132 = vmatprep.subr.bf16.mxu0 %v1040
    %1133 = vmatpush1.bf16.msra.mxu0 %v1039
    %1134 = vmatprep.subr.bf16.mxu0 %v1042
    %1135 = vmatpush1.bf16.msra.mxu0 %v1041
    %1136 = vmatprep.subr.bf16.mxu0 0
    %1137 = vmatpush1.bf16.msra.mxu0 0
    %1138 = vmatprep.subr.bf16.mxu0 0
    %1139 = vmatpush1.bf16.msra.mxu0 0
    %1140 = vmatprep.subr.bf16.mxu0 0
    %1141 = vmatpush1.bf16.msra.mxu0 0
    %1142 = vmatprep.subr.bf16.mxu0 0
    %1143 = vmatpush1.bf16.msra.mxu0 0
    %1144 = vmatprep.subr.bf16.mxu0 0
    %1145 = vmatpush1.bf16.msra.mxu0 0
    %1146 = vmatprep.subr.bf16.mxu0 0
    %1147 = vmatpush1.bf16.msra.mxu0 0
    %1148 = vmatprep.subr.bf16.mxu0 0
    %1149 = vmatpush1.bf16.msra.mxu0 0
    %1150 = vmatprep.subr.bf16.mxu0 0
    %1151 = vmatpush1.bf16.msra.mxu0 0
    %1152 = vmatprep.subr.bf16.mxu0 0
    %1153 = vmatpush1.bf16.msra.mxu0 0
    %1154 = vmatprep.subr.bf16.mxu0 0
    %1155 = vmatpush1.bf16.msra.mxu0 0
    %1156 = vmatprep.subr.bf16.mxu0 0
    %1157 = vmatpush1.bf16.msra.mxu0 0
    %1158 = vmatprep.subr.bf16.mxu0 0
    %1159 = vmatpush1.bf16.msra.mxu0 0
    %1160 = vmatprep.mubr.bf16.mxu0 0
    %1161 = vmatmul.mubr.bf16.gmra.mrb[0].mxu0 %v1126
    %v1162 = vpop.f32.mrb[0].mxu0
    %v1163 = vadd.f32 0.0, %v1162
    %v1164 = vpop.f32.mrb[0].mxu0
    %v1165 = vadd.f32 0.0, %v1164
    %v1166 = vpop.f32.mrb[0].mxu0
    %v1167 = vpop.f32.mrb[0].mxu0
    %1168 = vdwg.mxu0
    %v1171 = vrot.slane %v1163, 6
    %v1172 = vrot.slane %v1165, 6
    %v1175 = vadd.f32 %v1003, %v1171
    %v1176 = vadd.f32 %v1005, %v1172
    %v1177 = vxor.u32 %v1175, 2147483648
    %v1178 = vxor.u32 %v1176, 2147483648
    %v1179 = vmul.f32 %v1177, 1.442695
    %v1180 = vpow.pop %v1179
    %v1181 = vmul.f32 %v1178, 1.442695
    %v1182 = vpow.pop %v1181
    %v1183 = vadd.f32 %v1180, 1.0
    %v1184 = vadd.f32 %v1182, 1.0
    %v1185 = vrcp.pop %v1183
    %v1186 = vmul.f32 1.0, %v1185
    %v1187 = vrcp.pop %v1184
    %v1188 = vmul.f32 1.0, %v1187
    %v1189 = vtanh.pop %v1176
    %v1191 = vrot.slane %v1117, 6
    %v1193 = vmul.f32 %v1186, %v1191
    %1195 = vrot.lane.b32.xlu0 %v1189, 64
    %v1196 = vpop.permute.xlu0 %1195
    %v1198 = vmul.f32 %v1186, %v1196
    %1200 = vrot.lane.b32.xlu0 %v1198, 64
    %v1201 = vpop.permute.xlu0 %1200
    %v1203 = vadd.f32 %v1193, %v1201
    %v1204 = vtanh.pop %v1203
    %1206 = vrot.lane.b32.xlu0 %v1204, 64
    %v1207 = vpop.permute.xlu0 %1206
    %v1209 = vmul.f32 %v1188, %v1207
    %v1210 = vpack.c.bf16 %v1209, %v1209
    %v1212 = vrot.slane %v1210, 1
    %v1214 = vsel %vm199, %v1212, 0
    %1216 = vmatprep.subr.bf16.mxu0 %v1036
    %1217 = vmatpush1.bf16.msra.mxu0 %v1035
    %1218 = vmatprep.subr.bf16.mxu0 %v1038
    %1219 = vmatpush1.bf16.msra.mxu0 %v1037
    %1220 = vmatprep.subr.bf16.mxu0 %v1040
    %1221 = vmatpush1.bf16.msra.mxu0 %v1039
    %1222 = vmatprep.subr.bf16.mxu0 %v1042
    %1223 = vmatpush1.bf16.msra.mxu0 %v1041
    %1224 = vmatprep.subr.bf16.mxu0 0
    %1225 = vmatpush1.bf16.msra.mxu0 0
    %1226 = vmatprep.subr.bf16.mxu0 0
    %1227 = vmatpush1.bf16.msra.mxu0 0
    %1228 = vmatprep.subr.bf16.mxu0 0
    %1229 = vmatpush1.bf16.msra.mxu0 0
    %1230 = vmatprep.subr.bf16.mxu0 0
    %1231 = vmatpush1.bf16.msra.mxu0 0
    %1232 = vmatprep.subr.bf16.mxu0 0
    %1233 = vmatpush1.bf16.msra.mxu0 0
    %1234 = vmatprep.subr.bf16.mxu0 0
    %1235 = vmatpush1.bf16.msra.mxu0 0
    %1236 = vmatprep.subr.bf16.mxu0 0
    %1237 = vmatpush1.bf16.msra.mxu0 0
    %1238 = vmatprep.subr.bf16.mxu0 0
    %1239 = vmatpush1.bf16.msra.mxu0 0
    %1240 = vmatprep.subr.bf16.mxu0 0
    %1241 = vmatpush1.bf16.msra.mxu0 0
    %1242 = vmatprep.subr.bf16.mxu0 0
    %1243 = vmatpush1.bf16.msra.mxu0 0
    %1244 = vmatprep.subr.bf16.mxu0 0
    %1245 = vmatpush1.bf16.msra.mxu0 0
    %1246 = vmatprep.subr.bf16.mxu0 0
    %1247 = vmatpush1.bf16.msra.mxu0 0
    %1248 = vmatprep.mubr.bf16.mxu0 0
    %1249 = vmatmul.mubr.bf16.gmra.mrb[0].mxu0 %v1214
    %v1250 = vpop.f32.mrb[0].mxu0
    %v1251 = vadd.f32 0.0, %v1250
    %v1252 = vpop.f32.mrb[0].mxu0
    %v1253 = vadd.f32 0.0, %v1252
    %v1254 = vpop.f32.mrb[0].mxu0
    %v1255 = vpop.f32.mrb[0].mxu0
    %1256 = vdwg.mxu0
    %v1259 = vrot.slane %v1251, 4
    %v1260 = vrot.slane %v1253, 4
    %v1263 = vadd.f32 %v1003, %v1259
    %v1264 = vadd.f32 %v1005, %v1260
    %v1265 = vxor.u32 %v1263, 2147483648
    %v1266 = vxor.u32 %v1264, 2147483648
    %v1267 = vmul.f32 %v1265, 1.442695
    %v1268 = vpow.pop %v1267
    %v1269 = vmul.f32 %v1266, 1.442695
    %v1270 = vpow.pop %v1269
    %v1271 = vadd.f32 %v1268, 1.0
    %v1272 = vadd.f32 %v1270, 1.0
    %v1273 = vrcp.pop %v1271
    %v1274 = vmul.f32 1.0, %v1273
    %v1275 = vrcp.pop %v1272
    %v1276 = vmul.f32 1.0, %v1275
    %v1277 = vtanh.pop %v1264
    %v1279 = vrot.slane %v1203, 6
    %v1281 = vmul.f32 %v1274, %v1279
    %1283 = vrot.lane.b32.xlu0 %v1277, 64
    %v1284 = vpop.permute.xlu0 %1283
    %v1286 = vmul.f32 %v1274, %v1284
    %1288 = vrot.lane.b32.xlu0 %v1286, 64
    %v1289 = vpop.permute.xlu0 %1288
    %v1291 = vadd.f32 %v1281, %v1289
    %v1292 = vtanh.pop %v1291
    %1294 = vrot.lane.b32.xlu0 %v1292, 64
    %v1295 = vpop.permute.xlu0 %1294
    %v1297 = vmul.f32 %v1276, %v1295
    %v1298 = vpack.c.bf16 %v1297, %v1297
    %v1300 = vrot.slane %v1298, 2
    %v1302 = vsel %vm199, %v1300, 0
    %1304 = vmatprep.subr.bf16.mxu0 %v1036
    %1305 = vmatpush1.bf16.msra.mxu0 %v1035
    %1306 = vmatprep.subr.bf16.mxu0 %v1038
    %1307 = vmatpush1.bf16.msra.mxu0 %v1037
    %1308 = vmatprep.subr.bf16.mxu0 %v1040
    %1309 = vmatpush1.bf16.msra.mxu0 %v1039
    %1310 = vmatprep.subr.bf16.mxu0 %v1042
    %1311 = vmatpush1.bf16.msra.mxu0 %v1041
    %1312 = vmatprep.subr.bf16.mxu0 0
    %1313 = vmatpush1.bf16.msra.mxu0 0
    %1314 = vmatprep.subr.bf16.mxu0 0
    %1315 = vmatpush1.bf16.msra.mxu0 0
    %1316 = vmatprep.subr.bf16.mxu0 0
    %1317 = vmatpush1.bf16.msra.mxu0 0
    %1318 = vmatprep.subr.bf16.mxu0 0
    %1319 = vmatpush1.bf16.msra.mxu0 0
    %1320 = vmatprep.subr.bf16.mxu0 0
    %1321 = vmatpush1.bf16.msra.mxu0 0
    %1322 = vmatprep.subr.bf16.mxu0 0
    %1323 = vmatpush1.bf16.msra.mxu0 0
    %1324 = vmatprep.subr.bf16.mxu0 0
    %1325 = vmatpush1.bf16.msra.mxu0 0
    %1326 = vmatprep.subr.bf16.mxu0 0
    %1327 = vmatpush1.bf16.msra.mxu0 0
    %1328 = vmatprep.subr.bf16.mxu0 0
    %1329 = vmatpush1.bf16.msra.mxu0 0
    %1330 = vmatprep.subr.bf16.mxu0 0
    %1331 = vmatpush1.bf16.msra.mxu0 0
    %1332 = vmatprep.subr.bf16.mxu0 0
    %1333 = vmatpush1.bf16.msra.mxu0 0
    %1334 = vmatprep.subr.bf16.mxu0 0
    %1335 = vmatpush1.bf16.msra.mxu0 0
    %1336 = vmatprep.mubr.bf16.mxu0 0
    %1337 = vmatmul.mubr.bf16.gmra.mrb[0].mxu0 %v1302
    %v1338 = vpop.f32.mrb[0].mxu0
    %v1339 = vadd.f32 0.0, %v1338
    %v1340 = vpop.f32.mrb[0].mxu0
    %v1341 = vadd.f32 0.0, %v1340
    %v1342 = vpop.f32.mrb[0].mxu0
    %v1343 = vpop.f32.mrb[0].mxu0
    %1344 = vdwg.mxu0
    %v1347 = vrot.slane %v1339, 2
    %v1348 = vrot.slane %v1341, 2
    %v1351 = vadd.f32 %v1003, %v1347
    %v1352 = vadd.f32 %v1005, %v1348
    %v1353 = vxor.u32 %v1351, 2147483648
    %v1354 = vxor.u32 %v1352, 2147483648
    %v1355 = vmul.f32 %v1353, 1.442695
    %v1356 = vpow.pop %v1355
    %v1357 = vmul.f32 %v1354, 1.442695
    %v1358 = vpow.pop %v1357
    %v1359 = vadd.f32 %v1356, 1.0
    %v1360 = vadd.f32 %v1358, 1.0
    %v1361 = vrcp.pop %v1359
    %v1362 = vmul.f32 1.0, %v1361
    %v1363 = vrcp.pop %v1360
    %v1364 = vmul.f32 1.0, %v1363
    %v1365 = vtanh.pop %v1352
    %v1367 = vrot.slane %v1291, 6
    %v1369 = vmul.f32 %v1362, %v1367
    %1371 = vrot.lane.b32.xlu0 %v1365, 64
    %v1372 = vpop.permute.xlu0 %1371
    %v1374 = vmul.f32 %v1362, %v1372
    %1376 = vrot.lane.b32.xlu0 %v1374, 64
    %v1377 = vpop.permute.xlu0 %1376
    %v1379 = vadd.f32 %v1369, %v1377
    %v1380 = vtanh.pop %v1379
    %1382 = vrot.lane.b32.xlu0 %v1380, 64
    %v1383 = vpop.permute.xlu0 %1382
    %v1385 = vmul.f32 %v1364, %v1383
    %v1386 = vpack.c.bf16 %v1385, %v1385
    %v1388 = vrot.slane %v1386, 3
    %v1390 = vsel %vm199, %v1388, 0
    %1392 = vmatprep.subr.bf16.mxu0 %v1036
    %1393 = vmatpush1.bf16.msra.mxu0 %v1035
    %1394 = vmatprep.subr.bf16.mxu0 %v1038
    %1395 = vmatpush1.bf16.msra.mxu0 %v1037
    %1396 = vmatprep.subr.bf16.mxu0 %v1040
    %1397 = vmatpush1.bf16.msra.mxu0 %v1039
    %1398 = vmatprep.subr.bf16.mxu0 %v1042
    %1399 = vmatpush1.bf16.msra.mxu0 %v1041
    %1400 = vmatprep.subr.bf16.mxu0 0
    %1401 = vmatpush1.bf16.msra.mxu0 0
    %1402 = vmatprep.subr.bf16.mxu0 0
    %1403 = vmatpush1.bf16.msra.mxu0 0
    %1404 = vmatprep.subr.bf16.mxu0 0
    %1405 = vmatpush1.bf16.msra.mxu0 0
    %1406 = vmatprep.subr.bf16.mxu0 0
    %1407 = vmatpush1.bf16.msra.mxu0 0
    %1408 = vmatprep.subr.bf16.mxu0 0
    %1409 = vmatpush1.bf16.msra.mxu0 0
    %1410 = vmatprep.subr.bf16.mxu0 0
    %1411 = vmatpush1.bf16.msra.mxu0 0
    %1412 = vmatprep.subr.bf16.mxu0 0
    %1413 = vmatpush1.bf16.msra.mxu0 0
    %1414 = vmatprep.subr.bf16.mxu0 0
    %1415 = vmatpush1.bf16.msra.mxu0 0
    %1416 = vmatprep.subr.bf16.mxu0 0
    %1417 = vmatpush1.bf16.msra.mxu0 0
    %1418 = vmatprep.subr.bf16.mxu0 0
    %1419 = vmatpush1.bf16.msra.mxu0 0
    %1420 = vmatprep.subr.bf16.mxu0 0
    %1421 = vmatpush1.bf16.msra.mxu0 0
    %1422 = vmatprep.subr.bf16.mxu0 0
    %1423 = vmatpush1.bf16.msra.mxu0 0
    %1424 = vmatprep.mubr.bf16.mxu0 0
    %1425 = vmatmul.mubr.bf16.gmra.mrb[0].mxu0 %v1390
    %v1426 = vpop.f32.mrb[0].mxu0
    %v1427 = vadd.f32 0.0, %v1426
    %v1428 = vpop.f32.mrb[0].mxu0
    %v1429 = vadd.f32 0.0, %v1428
    %v1430 = vpop.f32.mrb[0].mxu0
    %v1431 = vpop.f32.mrb[0].mxu0
    %1432 = vdwg.mxu0
    %v1433 = vadd.f32 %v1007, %v1427
    %v1434 = vadd.f32 %v1009, %v1429
    %v1435 = vxor.u32 %v1433, 2147483648
    %v1436 = vxor.u32 %v1434, 2147483648
    %v1437 = vmul.f32 %v1435, 1.442695
    %v1438 = vpow.pop %v1437
    %v1439 = vmul.f32 %v1436, 1.442695
    %v1440 = vpow.pop %v1439
    %v1441 = vadd.f32 %v1438, 1.0
    %v1442 = vadd.f32 %v1440, 1.0
    %v1443 = vrcp.pop %v1441
    %v1444 = vmul.f32 1.0, %v1443
    %v1445 = vrcp.pop %v1442
    %v1446 = vmul.f32 1.0, %v1445
    %v1447 = vtanh.pop %v1434
    %v1449 = vrot.slane %v1379, 6
    %v1451 = vmul.f32 %v1444, %v1449
    %1453 = vrot.lane.b32.xlu0 %v1447, 64
    %v1454 = vpop.permute.xlu0 %1453
    %v1456 = vmul.f32 %v1444, %v1454
    %1458 = vrot.lane.b32.xlu0 %v1456, 64
    %v1459 = vpop.permute.xlu0 %1458
    %v1461 = vadd.f32 %v1451, %v1459
    %v1462 = vtanh.pop %v1461
    %1464 = vrot.lane.b32.xlu0 %v1462, 64
    %v1465 = vpop.permute.xlu0 %1464
    %v1467 = vmul.f32 %v1446, %v1465
    %v1468 = vpack.c.bf16 %v1467, %v1467
    %v1470 = vsel %vm199, %v1468, 0
    %1472 = vmatprep.subr.bf16.mxu0 %v1036
    %1473 = vmatpush1.bf16.msra.mxu0 %v1035
    %1474 = vmatprep.subr.bf16.mxu0 %v1038
    %1475 = vmatpush1.bf16.msra.mxu0 %v1037
    %1476 = vmatprep.subr.bf16.mxu0 %v1040
    %1477 = vmatpush1.bf16.msra.mxu0 %v1039
    %1478 = vmatprep.subr.bf16.mxu0 %v1042
    %1479 = vmatpush1.bf16.msra.mxu0 %v1041
    %1480 = vmatprep.subr.bf16.mxu0 0
    %1481 = vmatpush1.bf16.msra.mxu0 0
    %1482 = vmatprep.subr.bf16.mxu0 0
    %1483 = vmatpush1.bf16.msra.mxu0 0
    %1484 = vmatprep.subr.bf16.mxu0 0
    %1485 = vmatpush1.bf16.msra.mxu0 0
    %1486 = vmatprep.subr.bf16.mxu0 0
    %1487 = vmatpush1.bf16.msra.mxu0 0
    %1488 = vmatprep.subr.bf16.mxu0 0
    %1489 = vmatpush1.bf16.msra.mxu0 0
    %1490 = vmatprep.subr.bf16.mxu0 0
    %1491 = vmatpush1.bf16.msra.mxu0 0
    %1492 = vmatprep.subr.bf16.mxu0 0
    %1493 = vmatpush1.bf16.msra.mxu0 0
    %1494 = vmatprep.subr.bf16.mxu0 0
    %1495 = vmatpush1.bf16.msra.mxu0 0
    %1496 = vmatprep.subr.bf16.mxu0 0
    %1497 = vmatpush1.bf16.msra.mxu0 0
    %1498 = vmatprep.subr.bf16.mxu0 0
    %1499 = vmatpush1.bf16.msra.mxu0 0
    %1500 = vmatprep.subr.bf16.mxu0 0
    %1501 = vmatpush1.bf16.msra.mxu0 0
    %1502 = vmatprep.subr.bf16.mxu0 0
    %1503 = vmatpush1.bf16.msra.mxu0 0
    %1504 = vmatprep.mubr.bf16.mxu0 0
    %1505 = vmatmul.mubr.bf16.gmra.mrb[0].mxu0 %v1470
    %v1506 = vpop.f32.mrb[0].mxu0
    %v1507 = vadd.f32 0.0, %v1506
    %v1508 = vpop.f32.mrb[0].mxu0
    %v1509 = vadd.f32 0.0, %v1508
    %v1510 = vpop.f32.mrb[0].mxu0
    %v1511 = vpop.f32.mrb[0].mxu0
    %1512 = vdwg.mxu0
    %v1515 = vrot.slane %v1507, 6
    %v1516 = vrot.slane %v1509, 6
    %v1519 = vadd.f32 %v1007, %v1515
    %v1520 = vadd.f32 %v1009, %v1516
    %v1521 = vxor.u32 %v1519, 2147483648
    %v1522 = vxor.u32 %v1520, 2147483648
    %v1523 = vmul.f32 %v1521, 1.442695
    %v1524 = vpow.pop %v1523
    %v1525 = vmul.f32 %v1522, 1.442695
    %v1526 = vpow.pop %v1525
    %v1527 = vadd.f32 %v1524, 1.0
    %v1528 = vadd.f32 %v1526, 1.0
    %v1529 = vrcp.pop %v1527
    %v1530 = vmul.f32 1.0, %v1529
    %v1531 = vrcp.pop %v1528
    %v1532 = vmul.f32 1.0, %v1531
    %v1533 = vtanh.pop %v1520
    %v1535 = vrot.slane %v1461, 6
    %v1537 = vmul.f32 %v1530, %v1535
    %1539 = vrot.lane.b32.xlu0 %v1533, 64
    %v1540 = vpop.permute.xlu0 %1539
    %v1542 = vmul.f32 %v1530, %v1540
    %1544 = vrot.lane.b32.xlu0 %v1542, 64
    %v1545 = vpop.permute.xlu0 %1544
    %v1547 = vadd.f32 %v1537, %v1545
    %v1548 = vtanh.pop %v1547
    %1550 = vrot.lane.b32.xlu0 %v1548, 64
    %v1551 = vpop.permute.xlu0 %1550
    %v1553 = vmul.f32 %v1532, %v1551
    %v1554 = vpack.c.bf16 %v1553, %v1553
    %v1556 = vrot.slane %v1554, 1
    %v1558 = vsel %vm199, %v1556, 0
    %1560 = vmatprep.subr.bf16.mxu0 %v1036
    %1561 = vmatpush1.bf16.msra.mxu0 %v1035
    %1562 = vmatprep.subr.bf16.mxu0 %v1038
    %1563 = vmatpush1.bf16.msra.mxu0 %v1037
    %1564 = vmatprep.subr.bf16.mxu0 %v1040
    %1565 = vmatpush1.bf16.msra.mxu0 %v1039
    %1566 = vmatprep.subr.bf16.mxu0 %v1042
    %1567 = vmatpush1.bf16.msra.mxu0 %v1041
    %1568 = vmatprep.subr.bf16.mxu0 0
    %1569 = vmatpush1.bf16.msra.mxu0 0
    %1570 = vmatprep.subr.bf16.mxu0 0
    %1571 = vmatpush1.bf16.msra.mxu0 0
    %1572 = vmatprep.subr.bf16.mxu0 0
    %1573 = vmatpush1.bf16.msra.mxu0 0
    %1574 = vmatprep.subr.bf16.mxu0 0
    %1575 = vmatpush1.bf16.msra.mxu0 0
    %1576 = vmatprep.subr.bf16.mxu0 0
    %1577 = vmatpush1.bf16.msra.mxu0 0
    %1578 = vmatprep.subr.bf16.mxu0 0
    %1579 = vmatpush1.bf16.msra.mxu0 0
    %1580 = vmatprep.subr.bf16.mxu0 0
    %1581 = vmatpush1.bf16.msra.mxu0 0
    %1582 = vmatprep.subr.bf16.mxu0 0
    %1583 = vmatpush1.bf16.msra.mxu0 0
    %1584 = vmatprep.subr.bf16.mxu0 0
    %1585 = vmatpush1.bf16.msra.mxu0 0
    %1586 = vmatprep.subr.bf16.mxu0 0
    %1587 = vmatpush1.bf16.msra.mxu0 0
    %1588 = vmatprep.subr.bf16.mxu0 0
    %1589 = vmatpush1.bf16.msra.mxu0 0
    %1590 = vmatprep.subr.bf16.mxu0 0
    %1591 = vmatpush1.bf16.msra.mxu0 0
    %1592 = vmatprep.mubr.bf16.mxu0 0
    %1593 = vmatmul.mubr.bf16.gmra.mrb[0].mxu0 %v1558
    %v1594 = vpop.f32.mrb[0].mxu0
    %v1595 = vadd.f32 0.0, %v1594
    %v1596 = vpop.f32.mrb[0].mxu0
    %v1597 = vadd.f32 0.0, %v1596
    %v1598 = vpop.f32.mrb[0].mxu0
    %v1599 = vpop.f32.mrb[0].mxu0
    %1600 = vdwg.mxu0
    %v1603 = vrot.slane %v1595, 4
    %v1604 = vrot.slane %v1597, 4
    %v1607 = vadd.f32 %v1007, %v1603
    %v1608 = vadd.f32 %v1009, %v1604
    %v1609 = vxor.u32 %v1607, 2147483648
    %v1610 = vxor.u32 %v1608, 2147483648
    %v1611 = vmul.f32 %v1609, 1.442695
    %v1612 = vpow.pop %v1611
    %v1613 = vmul.f32 %v1610, 1.442695
    %v1614 = vpow.pop %v1613
    %v1615 = vadd.f32 %v1612, 1.0
    %v1616 = vadd.f32 %v1614, 1.0
    %v1617 = vrcp.pop %v1615
    %v1618 = vmul.f32 1.0, %v1617
    %v1619 = vrcp.pop %v1616
    %v1620 = vmul.f32 1.0, %v1619
    %v1621 = vtanh.pop %v1608
    %v1623 = vrot.slane %v1547, 6
    %v1625 = vmul.f32 %v1618, %v1623
    %1627 = vrot.lane.b32.xlu0 %v1621, 64
    %v1628 = vpop.permute.xlu0 %1627
    %v1630 = vmul.f32 %v1618, %v1628
    %1632 = vrot.lane.b32.xlu0 %v1630, 64
    %v1633 = vpop.permute.xlu0 %1632
    %v1635 = vadd.f32 %v1625, %v1633
    %v1636 = vtanh.pop %v1635
    %1638 = vrot.lane.b32.xlu0 %v1636, 64
    %v1639 = vpop.permute.xlu0 %1638
    %v1641 = vmul.f32 %v1620, %v1639
    %v1642 = vpack.c.bf16 %v1641, %v1641
    %v1644 = vrot.slane %v1642, 2
    %v1646 = vsel %vm199, %v1644, 0
    %1648 = vmatprep.subr.bf16.mxu0 %v1036
    %1649 = vmatpush1.bf16.msra.mxu0 %v1035
    %1650 = vmatprep.subr.bf16.mxu0 %v1038
    %1651 = vmatpush1.bf16.msra.mxu0 %v1037
    %1652 = vmatprep.subr.bf16.mxu0 %v1040
    %1653 = vmatpush1.bf16.msra.mxu0 %v1039
    %1654 = vmatprep.subr.bf16.mxu0 %v1042
    %1655 = vmatpush1.bf16.msra.mxu0 %v1041
    %1656 = vmatprep.subr.bf16.mxu0 0
    %1657 = vmatpush1.bf16.msra.mxu0 0
    %1658 = vmatprep.subr.bf16.mxu0 0
    %1659 = vmatpush1.bf16.msra.mxu0 0
    %1660 = vmatprep.subr.bf16.mxu0 0
    %1661 = vmatpush1.bf16.msra.mxu0 0
    %1662 = vmatprep.subr.bf16.mxu0 0
    %1663 = vmatpush1.bf16.msra.mxu0 0
    %1664 = vmatprep.subr.bf16.mxu0 0
    %1665 = vmatpush1.bf16.msra.mxu0 0
    %1666 = vmatprep.subr.bf16.mxu0 0
    %1667 = vmatpush1.bf16.msra.mxu0 0
    %1668 = vmatprep.subr.bf16.mxu0 0
    %1669 = vmatpush1.bf16.msra.mxu0 0
    %1670 = vmatprep.subr.bf16.mxu0 0
    %1671 = vmatpush1.bf16.msra.mxu0 0
    %1672 = vmatprep.subr.bf16.mxu0 0
    %1673 = vmatpush1.bf16.msra.mxu0 0
    %1674 = vmatprep.subr.bf16.mxu0 0
    %1675 = vmatpush1.bf16.msra.mxu0 0
    %1676 = vmatprep.subr.bf16.mxu0 0
    %1677 = vmatpush1.bf16.msra.mxu0 0
    %1678 = vmatprep.subr.bf16.mxu0 0
    %1679 = vmatpush1.bf16.msra.mxu0 0
    %1680 = vmatprep.mubr.bf16.mxu0 0
    %1681 = vmatmul.mubr.bf16.gmra.mrb[0].mxu0 %v1646
    %v1682 = vpop.f32.mrb[0].mxu0
    %v1683 = vadd.f32 0.0, %v1682
    %v1684 = vpop.f32.mrb[0].mxu0
    %v1685 = vadd.f32 0.0, %v1684
    %v1686 = vpop.f32.mrb[0].mxu0
    %v1687 = vpop.f32.mrb[0].mxu0
    %1688 = vdwg.mxu0
    %v1691 = vrot.slane %v1683, 2
    %v1692 = vrot.slane %v1685, 2
    %v1695 = vadd.f32 %v1007, %v1691
    %v1696 = vadd.f32 %v1009, %v1692
    %v1697 = vxor.u32 %v1695, 2147483648
    %v1698 = vxor.u32 %v1696, 2147483648
    %v1699 = vmul.f32 %v1697, 1.442695
    %v1700 = vpow.pop %v1699
    %v1701 = vmul.f32 %v1698, 1.442695
    %v1702 = vpow.pop %v1701
    %v1703 = vadd.f32 %v1700, 1.0
    %v1704 = vadd.f32 %v1702, 1.0
    %v1705 = vrcp.pop %v1703
    %v1706 = vmul.f32 1.0, %v1705
    %v1707 = vrcp.pop %v1704
    %v1708 = vmul.f32 1.0, %v1707
    %v1709 = vtanh.pop %v1696
    %v1711 = vrot.slane %v1635, 6
    %v1713 = vmul.f32 %v1706, %v1711
    %1715 = vrot.lane.b32.xlu0 %v1709, 64
    %v1716 = vpop.permute.xlu0 %1715
    %v1718 = vmul.f32 %v1706, %v1716
    %1720 = vrot.lane.b32.xlu0 %v1718, 64
    %v1721 = vpop.permute.xlu0 %1720
    %v1723 = vadd.f32 %v1713, %v1721
    %v1724 = vtanh.pop %v1723
    %1726 = vrot.lane.b32.xlu0 %v1724, 64
    %v1727 = vpop.permute.xlu0 %1726
    %v1729 = vmul.f32 %v1708, %v1727
    %v1730 = vpack.c.bf16 %v1729, %v1729
    %v1731 = vld [vmem:[%s7] sm:$0xf]
    %v1732 = vld [vmem:[%s7 + $0x4] sm:$0xf]
    %v1733 = vld [vmem:[%s7 + $0x8] sm:$0xf]
    %v1734 = vld [vmem:[%s7 + $0xc] sm:$0xf]
    %v1735 = vld [vmem:[%s7 + $0x10] sm:$0xf]
    %v1736 = vld [vmem:[%s7 + $0x14] sm:$0xf]
    %v1737 = vld [vmem:[%s7 + $0x18] sm:$0xf]
    %v1738 = vld [vmem:[%s7 + $0x1c] sm:$0xf]
    %v1739 = vld [vmem:[%s8] sm:$0x1]
    %v1741 = vlaneseq
    %v1742 = vshrl.u32 %v1741, 7
    %v1743 = vsub.s32 0, %v1742
    %v1744 = vrot.slane %v1739, %v1743
    %v1747 = vrot.slane %v1730, 3
    %v1756 = vunpack.c.l.b16 %v1731
    %v1757 = vunpack.c.l.b16 %v1732
    %v1758 = vunpack.c.l.b16 %v1733
    %v1759 = vunpack.c.l.b16 %v1734
    %v1760 = vunpack.c.l.b16 %v1735
    %v1761 = vunpack.c.l.b16 %v1736
    %v1762 = vunpack.c.l.b16 %v1737
    %v1763 = vunpack.c.l.b16 %v1738
    %v1764 = vpack.c.b16 %v1757, %v1756
    %v1765 = vpack.c.b16 %v1759, %v1758
    %v1766 = vpack.c.b16 %v1761, %v1760
    %v1767 = vpack.c.b16 %v1763, %v1762
    %v1773 = vsel %vm199, %v1747, 0
    %1775 = vmatprep.subr.bf16.mxu0 0
    %1776 = vmatpush1.bf16.msra.mxu0 %v1764
    %1777 = vmatprep.subr.bf16.mxu0 0
    %1778 = vmatpush1.bf16.msra.mxu0 %v1765
    %1779 = vmatprep.subr.bf16.mxu0 0
    %1780 = vmatpush1.bf16.msra.mxu0 %v1766
    %1781 = vmatprep.subr.bf16.mxu0 0
    %1782 = vmatpush1.bf16.msra.mxu0 %v1767
    %1783 = vmatprep.subr.bf16.mxu0 0
    %1784 = vmatpush1.bf16.msra.mxu0 0
    %1785 = vmatprep.subr.bf16.mxu0 0
    %1786 = vmatpush1.bf16.msra.mxu0 0
    %1787 = vmatprep.subr.bf16.mxu0 0
    %1788 = vmatpush1.bf16.msra.mxu0 0
    %1789 = vmatprep.subr.bf16.mxu0 0
    %1790 = vmatpush1.bf16.msra.mxu0 0
    %1791 = vmatprep.subr.bf16.mxu0 0
    %1792 = vmatpush1.bf16.msra.mxu0 0
    %1793 = vmatprep.subr.bf16.mxu0 0
    %1794 = vmatpush1.bf16.msra.mxu0 0
    %1795 = vmatprep.subr.bf16.mxu0 0
    %1796 = vmatpush1.bf16.msra.mxu0 0
    %1797 = vmatprep.subr.bf16.mxu0 0
    %1798 = vmatpush1.bf16.msra.mxu0 0
    %1799 = vmatprep.subr.bf16.mxu0 0
    %1800 = vmatpush1.bf16.msra.mxu0 0
    %1801 = vmatprep.subr.bf16.mxu0 0
    %1802 = vmatpush1.bf16.msra.mxu0 0
    %1803 = vmatprep.subr.bf16.mxu0 0
    %1804 = vmatpush1.bf16.msra.mxu0 0
    %1805 = vmatprep.subr.bf16.mxu0 0
    %1806 = vmatpush1.bf16.msra.mxu0 0
    %1807 = vmatprep.mubr.bf16.mxu0 0
    %1808 = vmatmul.mubr.bf16.gmra.mrb[0].mxu0 %v1773
    %v1809 = vpop.f32.mrb[0].mxu0
    %v1810 = vadd.f32 %v1744, %v1809
    %v1811 = vpop.f32.mrb[0].mxu0
    %v1812 = vpop.f32.mrb[0].mxu0
    %v1813 = vpop.f32.mrb[0].mxu0
    %1814 = vdwg.mxu0
    %vm1815 = vcmask 58368
    %1816 = vst.msk [vmem:[#allocation9] sm:$0x3] %vm1815, %v1810
    // Predicated region
    $region50: #{lstm_forward.1} parent=1 // pred_check
      _
    $region51: #{lstm_forward.1} parent=1 // pred_check_branch
      %1818 = sbr.rel (0) target = $region53
    $region52: #{lstm_forward.1} parent=1 // pred_region
      %s1820 = ssub.s32 32, 32
      %1821 = vsyncadd [#allocation5], %s1820
      %s1823 = sshll.u32 [#allocation9], 4
      %s1824 = int_to_ptr.vmem [resolvable:$true] %s1823
      %1826 = dma.vmem_to_hbm [thread:$0]  %s1824, 32, %s9, [#allocation5]
    $region53: #{lstm_forward.1} parent=1 // pred_fallthru
      _
    // Predicated region
    $region54: #{lstm_forward.1} parent=1 // pred_check
      _
    $region55: #{lstm_forward.1} parent=1 // pred_check_branch
      %1828 = sbr.rel (0) target = $region57
    $region56: #{lstm_forward.1} parent=1 // pred_region
      %1829 = dma.done [#allocation5], 32
    $region57: #{lstm_forward.1} parent=1 // pred_fallthru
      _
    %1830 = vsyncpa [#allocation4], 1
    %1831 = vsyncpa [#allocation7], 1
    %1832 = vsyncpa [#allocation5], 1

</llo_original>
